<compile_context>
chip_gen: v6e
topology: v6e:2x2x1
jax: 0.10.0
libtpu: 0.0.40
codegen_flags: <defaults>
</compile_context>

<pallas_src>
import jax
import jax.numpy as jnp
from jax.experimental import pallas as pl
from jax.experimental.pallas import tpu as pltpu

THRESHOLD = 1.0            # snn.Leaky default threshold
BETA = 0.9                 # MODEL_CONFIG['beta'] -- drops out of a single step (mem0 = 0)
FEAT_IN = 3197
DEFAULT_BATCH_TILE = 1024
DEFAULT_VMEM_LIMIT = 56 * 1024 * 1024   # <= v7x 64 MiB/TC; raise to ~100 MiB on v5e/v6e


def _round_up(n, m):
    return ((n + m - 1) // m) * m


def _snn_kernel(x_ref, w1_ref, b1_ref, w2_ref, b2_ref, w3_ref, b3_ref, out_ref):
    f32 = jnp.float32

    # In-register cast to the fc1 compute dtype (bf16 by default): HBM traffic
    # stays at the caller's dtype, MXU runs the fast bf16 path, f32 accumulate.
    x = x_ref[...].astype(w1_ref.dtype)

    # fc1 + max_pool1d(2).  w1 columns are laid out [even | odd], so pooling is
    # max(h[:, :64], h[:, 64:]) realized with an XLU lane-rotate (essentially free).
    h1 = jnp.dot(x, w1_ref[...], preferred_element_type=f32) + b1_ref[...]      # (TB,128)
    cur1 = jnp.maximum(h1, pltpu.roll(h1, shift=64, axis=1))[:, :64]            # (TB,64)

    # Leaky LIF step with mem0 = 0:  spk = Heaviside(cur - threshold), strict '>'.
    spk1 = (cur1 > THRESHOLD).astype(f32)

    # fc2 + max_pool1d(2), same [even | odd] fold (64 lanes -> just slice halves).
    h2 = jnp.dot(spk1, w2_ref[...], preferred_element_type=f32) + b2_ref[...]   # (TB,64)
    cur2 = jnp.maximum(h2[:, :32], h2[:, 32:])                                  # (TB,32)
    spk2 = (cur2 > THRESHOLD).astype(f32)

    # fc3
    out_ref[...] = (jnp.dot(spk2, w3_ref[...], preferred_element_type=f32)
                    + b3_ref[...]).astype(out_ref.dtype)


def _prepare_params(params, fc1_dtype):
    """Fold max_pool1d(kernel=2) into the weights: [even out-cols | odd out-cols]
    concatenated into ONE full-width matmul per layer.  fc1 weight stored in
    fc1_dtype (bf16 by default); fc2/fc3 stay f32 (tiny, keeps exactness)."""
    w1, b1, w2, b2, w3, b3 = params
    w1 = jnp.asarray(w1, jnp.float32)
    b1 = jnp.asarray(b1, jnp.float32)
    w2 = jnp.asarray(w2, jnp.float32)
    b2 = jnp.asarray(b2, jnp.float32)
    w3 = jnp.asarray(w3, jnp.float32)
    b3 = jnp.asarray(b3, jnp.float32)

    w1cat = jnp.concatenate([w1[:, 0::2], w1[:, 1::2]], axis=1).astype(fc1_dtype)  # (3197,128)
    b1cat = jnp.concatenate([b1[0::2], b1[1::2]]).reshape(1, -1)                   # (1,128) f32
    w2cat = jnp.concatenate([w2[:, 0::2], w2[:, 1::2]], axis=1)                    # (64,64)  f32
    b2cat = jnp.concatenate([b2[0::2], b2[1::2]]).reshape(1, -1)                   # (1,64)   f32
    return (w1cat, b1cat, w2cat, b2cat, w3, b3.reshape(1, -1))


def exoplanet_snn_forward(x, params, *, batch_tile=DEFAULT_BATCH_TILE,
                          fc1_dtype=jnp.bfloat16,
                          vmem_limit_bytes=DEFAULT_VMEM_LIMIT):
    """x: (B, 3197) in f32 or bf16 (bf16 halves the dominant HBM read).
    params: (w1, b1, w2, b2, w3, b3) with w1 (3197,128), w2 (64,64), w3 (32,2)
    (transposed nn.Linear weights: y = x @ W + b)."""
    B, f_in = x.shape
    assert f_in == FEAT_IN, f"expected {FEAT_IN} features, got {f_in}"

    # Batch tile: aim for >=4 grid steps when B allows (>=2 per TensorCore on
    # v7x so megacore + DMA pipelining engage), 8-sublane granule, capped by
    # batch_tile for VMEM.
    tb = max(8, min(_round_up(int(batch_tile), 8), _round_up(pl.cdiv(B, 4), 8)))
    b_pad = _round_up(B, tb)
    grid = (b_pad // tb,)

    # No feature-dim pad and no dtype-cast copy of x (cast happens in-register
    # inside the kernel).  Batch is only padded when ragged; pass B as a
    # multiple of the tile (or 8) to avoid even this copy.
    if b_pad != B:
        x = jnp.pad(x, ((0, b_pad - B), (0, 0)))

    prepped = _prepare_params(params, fc1_dtype)

    x_spec = pl.BlockSpec((tb, FEAT_IN), lambda i: (i, 0))      # streamed, double-buffered
    in_specs = [x_spec] + [
        pl.BlockSpec(p.shape, lambda i: (0, 0)) for p in prepped  # VMEM-resident weights
    ]
    out_spec = pl.BlockSpec((tb, 2), lambda i: (i, 0))

    flops = 2 * b_pad * (FEAT_IN * 128 + 64 * 64 + 32 * 2)
    bytes_accessed = (b_pad * FEAT_IN * x.dtype.itemsize
                      + sum(int(p.size) * p.dtype.itemsize for p in prepped)
                      + b_pad * 2 * 4)

    out = pl.pallas_call(
        _snn_kernel,
        out_shape=jax.ShapeDtypeStruct((b_pad, 2), jnp.float32),
        grid=grid,
        in_specs=in_specs,
        out_specs=out_spec,
        compiler_params=pltpu.CompilerParams(
            dimension_semantics=("parallel",),            # megacore split on v7x
            vmem_limit_bytes=int(vmem_limit_bytes)),
        cost_estimate=pl.CostEstimate(flops=flops, transcendentals=0,
                                      bytes_accessed=int(bytes_accessed)),
    )(x, *prepped)
    return out[:B]


def _ref_forward(x, params, fc1_dtype=jnp.bfloat16):
    """Plain-JAX reference mirroring the PyTorch forward; fc1 inputs are
    quantized to the same compute dtype as the kernel so spike decisions match."""
    w1, b1, w2, b2, w3, b3 = params
    B = x.shape[0]
    h1 = jnp.dot(x.astype(fc1_dtype),
                 jnp.asarray(w1, jnp.float32).astype(fc1_dtype),
                 preferred_element_type=jnp.float32) + b1
    cur1 = jnp.max(h1.reshape(B, 64, 2), axis=-1)          # max_pool1d(., 2)
    spk1 = (cur1 > THRESHOLD).astype(jnp.float32)
    h2 = spk1 @ w2 + b2
    cur2 = jnp.max(h2.reshape(B, 32, 2), axis=-1)
    spk2 = (cur2 > THRESHOLD).astype(jnp.float32)
    return spk2 @ w3 + b3


if __name__ == "__main__":
    key = jax.random.PRNGKey(0)
    ks = jax.random.split(key, 7)

    # Deterministic synthetic parameters (nn.Linear(3197,128), (64,64), (32,2)).
    # Scales chosen so some pre-activations exceed the spike threshold.
    w1 = jax.random.normal(ks[0], (3197, 128), jnp.float32) * 0.05
    b1 = jax.random.normal(ks[1], (128,), jnp.float32) * 0.10
    w2 = jax.random.normal(ks[2], (64, 64), jnp.float32) * 0.25
    b2 = jax.random.normal(ks[3], (64,), jnp.float32) * 0.10
    w3 = jax.random.normal(ks[4], (32, 2), jnp.float32) * 0.30
    b3 = jax.random.normal(ks[5], (2,), jnp.float32) * 0.10
    params = (w1, b1, w2, b2, w3, b3)

    # Test 1: tiny batch (B=2) -> single grid step with a ragged-batch pad (tb=8).
    x = jax.random.normal(ks[6], (2, 3197), jnp.float32)
    out = jax.block_until_ready(exoplanet_snn_forward(x, params))
    ref = _ref_forward(x, params)
    assert out.shape == (2, 2)
    assert jnp.allclose(out, ref, atol=1e-3, rtol=1e-3), (out, ref)

    # Test 2: multi-step grid (B=64 rows tiled from the same data, batch_tile=16
    # -> grid=(4,), no padding) -- exercises the pipelined x stream and the
    # VMEM-resident weights without introducing new near-threshold values.
    x_big = jnp.tile(x, (32, 1))
    out_big = jax.block_until_ready(
        exoplanet_snn_forward(x_big, params, batch_tile=16))
    ref_big = jnp.tile(ref, (32, 1))
    assert out_big.shape == (64, 2)
    assert jnp.allclose(out_big, ref_big, atol=1e-3, rtol=1e-3), (out_big, ref_big)

    # TODO(synk): surrogate.fast_sigmoid (backward-only) and the unused
    # nn.Softmax / return_spikes outputs have no forward-pass effect; omitted.
    print("KERNEL_OK")
</pallas_src>

<mosaic_0001>
module attributes {stable_mosaic.version = 11 : i64} {
  func.func @_snn_kernel(%arg0: i32, %arg1: memref<8x3197xf32, #tpu.memory_space<vmem>>, %arg2: memref<3197x128xbf16, #tpu.memory_space<vmem>>, %arg3: memref<1x128xf32, #tpu.memory_space<vmem>>, %arg4: memref<64x64xf32, #tpu.memory_space<vmem>>, %arg5: memref<1x64xf32, #tpu.memory_space<vmem>>, %arg6: memref<32x2xf32, #tpu.memory_space<vmem>>, %arg7: memref<1x2xf32, #tpu.memory_space<vmem>>, %arg8: memref<8x2xf32, #tpu.memory_space<vmem>>) attributes {dimension_semantics = [#tpu.dimension_semantics<parallel>], iteration_bounds = array<i64: 1>, scalar_prefetch = 0 : i64, scratch_operands = 0 : i64, tpu.core_type = #tpu.core_type<tc>, window_params = [{transform_indices = @transform_0, window_bounds = array<i64: 8, 3197>}, {pipeline_mode = #tpu.pipeline_mode<synchronous>, transform_indices = @transform_1, window_bounds = array<i64: 3197, 128>}, {pipeline_mode = #tpu.pipeline_mode<synchronous>, transform_indices = @transform_2, window_bounds = array<i64: 1, 128>}, {pipeline_mode = #tpu.pipeline_mode<synchronous>, transform_indices = @transform_3, window_bounds = array<i64: 64, 64>}, {pipeline_mode = #tpu.pipeline_mode<synchronous>, transform_indices = @transform_4, window_bounds = array<i64: 1, 64>}, {pipeline_mode = #tpu.pipeline_mode<synchronous>, transform_indices = @transform_5, window_bounds = array<i64: 32, 2>}, {pipeline_mode = #tpu.pipeline_mode<synchronous>, transform_indices = @transform_6, window_bounds = array<i64: 1, 2>}, {transform_indices = @transform_7, window_bounds = array<i64: 8, 2>}]} {
    %c0 = arith.constant 0 : index
    %c0_0 = arith.constant 0 : index
    %0 = vector.load %arg1[%c0, %c0_0] : memref<8x3197xf32, #tpu.memory_space<vmem>>, vector<8x3197xf32>
    %1 = arith.truncf %0 : vector<8x3197xf32> to vector<8x3197xbf16>
    %c0_1 = arith.constant 0 : index
    %c0_2 = arith.constant 0 : index
    %2 = vector.load %arg2[%c0_1, %c0_2] : memref<3197x128xbf16, #tpu.memory_space<vmem>>, vector<3197x128xbf16>
    %cst = arith.constant dense<0.000000e+00> : vector<8x128xf32>
    %3 = tpu.matmul %1, %2, %cst {dimension_numbers = #tpu.dot_dimension_numbers<[1], [0], [0], [1], [0, 0, 1, 1], [], []>} : vector<8x3197xbf16>, vector<3197x128xbf16>, vector<8x128xf32> -> vector<8x128xf32>
    %c0_3 = arith.constant 0 : index
    %c0_4 = arith.constant 0 : index
    %4 = vector.load %arg3[%c0_3, %c0_4] : memref<1x128xf32, #tpu.memory_space<vmem>>, vector<1x128xf32>
    %5 = vector.broadcast %4 : vector<1x128xf32> to vector<8x128xf32>
    %6 = arith.addf %3, %5 : vector<8x128xf32>
    %c64_i32 = arith.constant 64 : i32
    %7 = tpu.dynamic_rotate %6 by %c64_i32 dim 1 : vector<8x128xf32>, i32 -> vector<8x128xf32>
    %8 = arith.maximumf %6, %7 : vector<8x128xf32>
    %9 = vector.extract_strided_slice %8 {offsets = [0, 0], sizes = [8, 64], strides = [1, 1]} : vector<8x128xf32> to vector<8x64xf32>
    %cst_5 = arith.constant 1.000000e+00 : f32
    %10 = vector.broadcast %cst_5 : f32 to vector<8x64xf32>
    %11 = arith.cmpf ogt, %9, %10 : vector<8x64xf32>
    %12 = arith.extui %11 : vector<8x64xi1> to vector<8x64xi32>
    %13 = arith.sitofp %12 : vector<8x64xi32> to vector<8x64xf32>
    %c0_6 = arith.constant 0 : index
    %c0_7 = arith.constant 0 : index
    %14 = vector.load %arg4[%c0_6, %c0_7] : memref<64x64xf32, #tpu.memory_space<vmem>>, vector<64x64xf32>
    %cst_8 = arith.constant dense<0.000000e+00> : vector<8x64xf32>
    %15 = tpu.matmul %13, %14, %cst_8 {dimension_numbers = #tpu.dot_dimension_numbers<[1], [0], [0], [1], [0, 0, 1, 1], [], []>} : vector<8x64xf32>, vector<64x64xf32>, vector<8x64xf32> -> vector<8x64xf32>
    %c0_9 = arith.constant 0 : index
    %c0_10 = arith.constant 0 : index
    %16 = vector.load %arg5[%c0_9, %c0_10] : memref<1x64xf32, #tpu.memory_space<vmem>>, vector<1x64xf32>
    %17 = vector.broadcast %16 : vector<1x64xf32> to vector<8x64xf32>
    %18 = arith.addf %15, %17 : vector<8x64xf32>
    %19 = vector.extract_strided_slice %18 {offsets = [0, 0], sizes = [8, 32], strides = [1, 1]} : vector<8x64xf32> to vector<8x32xf32>
    %20 = vector.extract_strided_slice %18 {offsets = [0, 32], sizes = [8, 32], strides = [1, 1]} : vector<8x64xf32> to vector<8x32xf32>
    %21 = arith.maximumf %19, %20 : vector<8x32xf32>
    %cst_11 = arith.constant 1.000000e+00 : f32
    %22 = vector.broadcast %cst_11 : f32 to vector<8x32xf32>
    %23 = arith.cmpf ogt, %21, %22 : vector<8x32xf32>
    %24 = arith.extui %23 : vector<8x32xi1> to vector<8x32xi32>
    %25 = arith.sitofp %24 : vector<8x32xi32> to vector<8x32xf32>
    %c0_12 = arith.constant 0 : index
    %c0_13 = arith.constant 0 : index
    %26 = vector.load %arg6[%c0_12, %c0_13] : memref<32x2xf32, #tpu.memory_space<vmem>>, vector<32x2xf32>
    %cst_14 = arith.constant dense<0.000000e+00> : vector<8x2xf32>
    %27 = tpu.matmul %25, %26, %cst_14 {dimension_numbers = #tpu.dot_dimension_numbers<[1], [0], [0], [1], [0, 0, 1, 1], [], []>} : vector<8x32xf32>, vector<32x2xf32>, vector<8x2xf32> -> vector<8x2xf32>
    %c0_15 = arith.constant 0 : index
    %c0_16 = arith.constant 0 : index
    %28 = vector.load %arg7[%c0_15, %c0_16] : memref<1x2xf32, #tpu.memory_space<vmem>>, vector<1x2xf32>
    %29 = vector.broadcast %28 : vector<1x2xf32> to vector<8x2xf32>
    %30 = arith.addf %27, %29 : vector<8x2xf32>
    %c0_17 = arith.constant 0 : index
    %c0_18 = arith.constant 0 : index
    %31 = vector.load %arg8[%c0_17, %c0_18] : memref<8x2xf32, #tpu.memory_space<vmem>>, vector<8x2xf32>
    tpu.vector_store %arg8[%c0_17, %c0_18], %30 {strides = array<i32>} : memref<8x2xf32, #tpu.memory_space<vmem>>, vector<8x2xf32>,
    return
  }
  func.func @transform_0(%arg0: i32) -> (i32, i32) {
    %c0_i32 = arith.constant 0 : i32
    %c0_i32_0 = arith.constant 0 : i32
    return %arg0, %c0_i32 : i32, i32
  }
  func.func @transform_1(%arg0: i32) -> (i32, i32) {
    %c0_i32 = arith.constant 0 : i32
    %c0_i32_0 = arith.constant 0 : i32
    %c0_i32_1 = arith.constant 0 : i32
    return %c0_i32, %c0_i32_0 : i32, i32
  }
  func.func @transform_2(%arg0: i32) -> (i32, i32) {
    %c0_i32 = arith.constant 0 : i32
    %c0_i32_0 = arith.constant 0 : i32
    %c0_i32_1 = arith.constant 0 : i32
    return %c0_i32, %c0_i32_0 : i32, i32
  }
  func.func @transform_3(%arg0: i32) -> (i32, i32) {
    %c0_i32 = arith.constant 0 : i32
    %c0_i32_0 = arith.constant 0 : i32
    %c0_i32_1 = arith.constant 0 : i32
    return %c0_i32, %c0_i32_0 : i32, i32
  }
  func.func @transform_4(%arg0: i32) -> (i32, i32) {
    %c0_i32 = arith.constant 0 : i32
    %c0_i32_0 = arith.constant 0 : i32
    %c0_i32_1 = arith.constant 0 : i32
    return %c0_i32, %c0_i32_0 : i32, i32
  }
  func.func @transform_5(%arg0: i32) -> (i32, i32) {
    %c0_i32 = arith.constant 0 : i32
    %c0_i32_0 = arith.constant 0 : i32
    %c0_i32_1 = arith.constant 0 : i32
    return %c0_i32, %c0_i32_0 : i32, i32
  }
  func.func @transform_6(%arg0: i32) -> (i32, i32) {
    %c0_i32 = arith.constant 0 : i32
    %c0_i32_0 = arith.constant 0 : i32
    %c0_i32_1 = arith.constant 0 : i32
    return %c0_i32, %c0_i32_0 : i32, i32
  }
  func.func @transform_7(%arg0: i32) -> (i32, i32) {
    %c0_i32 = arith.constant 0 : i32
    %c0_i32_0 = arith.constant 0 : i32
    return %arg0, %c0_i32 : i32, i32
  }
}

</mosaic_0001>

<llo_original>
// kernel: tpu_custom_call.1
$region0: #{tpu_custom_call.1}
  #allocation0 [shape = 'u32[]', space=smem, size = 0x4, offset = 0x4, fixed_abs, tag = 'smem constant byte address 0x4 - core index']
  #allocation1 [shape = 'u32[144,128]{1,0:T(1,128)}', space=vmem, size = 0x12000, scoped, tag = 'internal scratch']
  %s0 = inlined_call_operand.hbm [shape: f32[8,3197], index: 0, kind: input, shape index: {}]
  %s1 = inlined_call_operand.hbm [shape: bf16[3197,128], index: 1, kind: input, shape index: {}]
  %s2 = inlined_call_operand.vmem [shape: f32[1,128], index: 2, kind: input, shape index: {}]
  %s3 = inlined_call_operand.hbm [shape: f32[64,64], index: 3, kind: input, shape index: {}]
  %s4 = inlined_call_operand.vmem [shape: f32[1,64], index: 4, kind: input, shape index: {}]
  %s5 = inlined_call_operand.vmem [shape: f32[32,2], index: 5, kind: input, shape index: {}]
  %s6 = inlined_call_operand.vmem [shape: f32[1,2], index: 6, kind: input, shape index: {}]
  %s7 = inlined_call_operand.vmem [shape: f32[8,2], index: 7, kind: output, shape index: {}]
  %s8 = sld [smem:[#allocation0]]
  $region50: #{tpu_custom_call.1} parent=0
    _
  %s10 = ssub.s32 1, %s8
  %s11 = scalar_select 0, %s10, %s8
  $region1: #{tpu_custom_call.1} parent=0
    #allocation2 [shape = 'u8[102400]{0}', space=vmem, size = 0x19000, scoped, tag = 'input window, operand 0, single buffered']
    #allocation3 [shape = 's32[1]{0}', space=sflag, size = 0x4, scoped, tag = 'scoped memory for tpu_custom_call.1']
    #allocation4 [shape = 'u8[819200]{0}', space=vmem, size = 0xc8000, scoped, tag = 'input window, operand 1, single buffered']
    #allocation5 [shape = 's32[1]{0}', space=sflag, size = 0x4, scoped, tag = 'scoped memory for tpu_custom_call.1']
    #allocation6 [shape = 'u8[32768]{0}', space=vmem, size = 0x8000, scoped, tag = 'input window, operand 3, single buffered']
    %12 = vsyncpa [#allocation3], 0
    %13 = vsyncpa [#allocation5], 0
    // Predicated region
    $region2: #{tpu_custom_call.1} parent=1 // pred_check
      _
    $region3: #{tpu_custom_call.1} parent=1 // pred_check_branch
      %15 = sbr.rel (0) target = $region5
    $region4: #{tpu_custom_call.1} parent=1 // pred_region
      %s17 = ssub.s32 3200, 3200
      %18 = vsyncadd [#allocation3], %s17
      %s20 = sshll.u32 [#allocation2], 4
      %s21 = int_to_ptr.vmem [resolvable:$true] %s20
      %23 = dma.hbm_to_vmem [thread:$0]  %s0, 3200, %s21, [#allocation3]
    $region5: #{tpu_custom_call.1} parent=1 // pred_fallthru
      _
    // Predicated region
    $region6: #{tpu_custom_call.1} parent=1 // pred_check
      _
    $region7: #{tpu_custom_call.1} parent=1 // pred_check_branch
      %25 = sbr.rel (0) target = $region9
    $region8: #{tpu_custom_call.1} parent=1 // pred_region
      %s27 = ssub.s32 25600, 25600
      %28 = vsyncadd [#allocation5], %s27
      %s29 = sshll.u32 [#allocation4], 4
      %s30 = int_to_ptr.vmem [resolvable:$true] %s29
      %35 = dma.hbm_to_vmem [thread:$0]  %s1, 25600, %s30, [#allocation5], 64, 64, 4
    $region9: #{tpu_custom_call.1} parent=1 // pred_fallthru
      _
    // Predicated region
    $region10: #{tpu_custom_call.1} parent=1 // pred_check
      _
    $region11: #{tpu_custom_call.1} parent=1 // pred_check_branch
      %37 = sbr.rel (0) target = $region13
    $region12: #{tpu_custom_call.1} parent=1 // pred_region
      _
    $region13: #{tpu_custom_call.1} parent=1 // pred_fallthru
      _
    // Predicated region
    $region14: #{tpu_custom_call.1} parent=1 // pred_check
      _
    $region15: #{tpu_custom_call.1} parent=1 // pred_check_branch
      %39 = sbr.rel (0) target = $region17
    $region16: #{tpu_custom_call.1} parent=1 // pred_region
      %s41 = ssub.s32 1024, 1024
      %42 = vsyncadd [#allocation5], %s41
      %s43 = sshll.u32 [#allocation6], 4
      %s44 = int_to_ptr.vmem [resolvable:$true] %s43
      %49 = dma.hbm_to_vmem [thread:$0]  %s3, 1024, %s44, [#allocation5], 128, 128, 8
    $region17: #{tpu_custom_call.1} parent=1 // pred_fallthru
      _
    // Predicated region
    $region18: #{tpu_custom_call.1} parent=1 // pred_check
      _
    $region19: #{tpu_custom_call.1} parent=1 // pred_check_branch
      %51 = sbr.rel (0) target = $region21
    $region20: #{tpu_custom_call.1} parent=1 // pred_region
      _
    $region21: #{tpu_custom_call.1} parent=1 // pred_fallthru
      _
    // Predicated region
    $region22: #{tpu_custom_call.1} parent=1 // pred_check
      _
    $region23: #{tpu_custom_call.1} parent=1 // pred_check_branch
      %53 = sbr.rel (0) target = $region25
    $region24: #{tpu_custom_call.1} parent=1 // pred_region
      _
    $region25: #{tpu_custom_call.1} parent=1 // pred_fallthru
      _
    // Predicated region
    $region26: #{tpu_custom_call.1} parent=1 // pred_check
      _
    $region27: #{tpu_custom_call.1} parent=1 // pred_check_branch
      %55 = sbr.rel (0) target = $region29
    $region28: #{tpu_custom_call.1} parent=1 // pred_region
      _
    $region29: #{tpu_custom_call.1} parent=1 // pred_fallthru
      _
    // Predicated region
    $region30: #{tpu_custom_call.1} parent=1 // pred_check
      _
    $region31: #{tpu_custom_call.1} parent=1 // pred_check_branch
      %57 = sbr.rel (0) target = $region33
    $region32: #{tpu_custom_call.1} parent=1 // pred_region
      %58 = dma.done [#allocation3], 3200
    $region33: #{tpu_custom_call.1} parent=1 // pred_fallthru
      _
    // Predicated region
    $region34: #{tpu_custom_call.1} parent=1 // pred_check
      _
    $region35: #{tpu_custom_call.1} parent=1 // pred_check_branch
      %60 = sbr.rel (0) target = $region37
    $region36: #{tpu_custom_call.1} parent=1 // pred_region
      %61 = dma.done [#allocation5], 25600
    $region37: #{tpu_custom_call.1} parent=1 // pred_fallthru
      _
    // Predicated region
    $region38: #{tpu_custom_call.1} parent=1 // pred_check
      _
    $region39: #{tpu_custom_call.1} parent=1 // pred_check_branch
      %63 = sbr.rel (0) target = $region41
    $region40: #{tpu_custom_call.1} parent=1 // pred_region
      %64 = dma.done [#allocation5], 1024
    $region41: #{tpu_custom_call.1} parent=1 // pred_fallthru
      _
    %v66 = vld [vmem:[#allocation2] sm:$0xff]
    %v67 = vld [vmem:[#allocation2 + $0x8] sm:$0xff]
    %v68 = vld [vmem:[#allocation2 + $0x10] sm:$0xff]
    %v69 = vld [vmem:[#allocation2 + $0x18] sm:$0xff]
    %v70 = vld [vmem:[#allocation2 + $0x20] sm:$0xff]
    %v71 = vld [vmem:[#allocation2 + $0x28] sm:$0xff]
    %v72 = vld [vmem:[#allocation2 + $0x30] sm:$0xff]
    %v73 = vld [vmem:[#allocation2 + $0x38] sm:$0xff]
    %v74 = vld [vmem:[#allocation2 + $0x40] sm:$0xff]
    %v75 = vld [vmem:[#allocation2 + $0x48] sm:$0xff]
    %v76 = vld [vmem:[#allocation2 + $0x50] sm:$0xff]
    %v77 = vld [vmem:[#allocation2 + $0x58] sm:$0xff]
    %v78 = vld [vmem:[#allocation2 + $0x60] sm:$0xff]
    %v79 = vld [vmem:[#allocation2 + $0x68] sm:$0xff]
    %v80 = vld [vmem:[#allocation2 + $0x70] sm:$0xff]
    %v81 = vld [vmem:[#allocation2 + $0x78] sm:$0xff]
    %v82 = vld [vmem:[#allocation2 + $0x80] sm:$0xff]
    %v83 = vld [vmem:[#allocation2 + $0x88] sm:$0xff]
    %v84 = vld [vmem:[#allocation2 + $0x90] sm:$0xff]
    %v85 = vld [vmem:[#allocation2 + $0x98] sm:$0xff]
    %v86 = vld [vmem:[#allocation2 + $0xa0] sm:$0xff]
    %v87 = vld [vmem:[#allocation2 + $0xa8] sm:$0xff]
    %v88 = vld [vmem:[#allocation2 + $0xb0] sm:$0xff]
    %v89 = vld [vmem:[#allocation2 + $0xb8] sm:$0xff]
    %v90 = vld [vmem:[#allocation2 + $0xc0] sm:$0xff]
    %v91 = vpack.c.bf16 %v66, %v66
    %v92 = vpack.c.bf16 %v67, %v67
    %v93 = vpack.c.bf16 %v68, %v68
    %v94 = vpack.c.bf16 %v69, %v69
    %v95 = vpack.c.bf16 %v70, %v70
    %v96 = vpack.c.bf16 %v71, %v71
    %v97 = vpack.c.bf16 %v72, %v72
    %v98 = vpack.c.bf16 %v73, %v73
    %v99 = vpack.c.bf16 %v74, %v74
    %v100 = vpack.c.bf16 %v75, %v75
    %v101 = vpack.c.bf16 %v76, %v76
    %v102 = vpack.c.bf16 %v77, %v77
    %v103 = vpack.c.bf16 %v78, %v78
    %v104 = vpack.c.bf16 %v79, %v79
    %v105 = vpack.c.bf16 %v80, %v80
    %v106 = vpack.c.bf16 %v81, %v81
    %v107 = vpack.c.bf16 %v82, %v82
    %v108 = vpack.c.bf16 %v83, %v83
    %v109 = vpack.c.bf16 %v84, %v84
    %v110 = vpack.c.bf16 %v85, %v85
    %v111 = vpack.c.bf16 %v86, %v86
    %v112 = vpack.c.bf16 %v87, %v87
    %v113 = vpack.c.bf16 %v88, %v88
    %v114 = vpack.c.bf16 %v89, %v89
    %v115 = vpack.c.bf16 %v90, %v90
    %v116 = vld [vmem:[#allocation4] sm:$0xf]
    %v117 = vld [vmem:[#allocation4 + $0x4] sm:$0xf]
    %v118 = vld [vmem:[#allocation4 + $0x8] sm:$0xf]
    %v119 = vld [vmem:[#allocation4 + $0xc] sm:$0xf]
    %v120 = vld [vmem:[#allocation4 + $0x10] sm:$0xf]
    %v121 = vld [vmem:[#allocation4 + $0x14] sm:$0xf]
    %v122 = vld [vmem:[#allocation4 + $0x18] sm:$0xf]
    %v123 = vld [vmem:[#allocation4 + $0x1c] sm:$0xf]
    %v124 = vld [vmem:[#allocation4 + $0x20] sm:$0xf]
    %v125 = vld [vmem:[#allocation4 + $0x24] sm:$0xf]
    %v126 = vld [vmem:[#allocation4 + $0x28] sm:$0xf]
    %v127 = vld [vmem:[#allocation4 + $0x2c] sm:$0xf]
    %v128 = vld [vmem:[#allocation4 + $0x30] sm:$0xf]
    %v129 = vld [vmem:[#allocation4 + $0x34] sm:$0xf]
    %v130 = vld [vmem:[#allocation4 + $0x38] sm:$0xf]
    %v131 = vld [vmem:[#allocation4 + $0x3c] sm:$0xf]
    %v132 = vld [vmem:[#allocation4 + $0x40] sm:$0xf]
    %v133 = vld [vmem:[#allocation4 + $0x44] sm:$0xf]
    %v134 = vld [vmem:[#allocation4 + $0x48] sm:$0xf]
    %v135 = vld [vmem:[#allocation4 + $0x4c] sm:$0xf]
    %v136 = vld [vmem:[#allocation4 + $0x50] sm:$0xf]
    %v137 = vld [vmem:[#allocation4 + $0x54] sm:$0xf]
    %v138 = vld [vmem:[#allocation4 + $0x58] sm:$0xf]
    %v139 = vld [vmem:[#allocation4 + $0x5c] sm:$0xf]
    %v140 = vld [vmem:[#allocation4 + $0x60] sm:$0xf]
    %v141 = vld [vmem:[#allocation4 + $0x64] sm:$0xf]
    %v142 = vld [vmem:[#allocation4 + $0x68] sm:$0xf]
    %v143 = vld [vmem:[#allocation4 + $0x6c] sm:$0xf]
    %v144 = vld [vmem:[#allocation4 + $0x70] sm:$0xf]
    %v145 = vld [vmem:[#allocation4 + $0x74] sm:$0xf]
    %v146 = vld [vmem:[#allocation4 + $0x78] sm:$0xf]
    %v147 = vld [vmem:[#allocation4 + $0x7c] sm:$0xf]
    %v148 = vld [vmem:[#allocation4 + $0x80] sm:$0xf]
    %v149 = vld [vmem:[#allocation4 + $0x84] sm:$0xf]
    %v150 = vld [vmem:[#allocation4 + $0x88] sm:$0xf]
    %v151 = vld [vmem:[#allocation4 + $0x8c] sm:$0xf]
    %v152 = vld [vmem:[#allocation4 + $0x90] sm:$0xf]
    %v153 = vld [vmem:[#allocation4 + $0x94] sm:$0xf]
    %v154 = vld [vmem:[#allocation4 + $0x98] sm:$0xf]
    %v155 = vld [vmem:[#allocation4 + $0x9c] sm:$0xf]
    %v156 = vld [vmem:[#allocation4 + $0xa0] sm:$0xf]
    %v157 = vld [vmem:[#allocation4 + $0xa4] sm:$0xf]
    %v158 = vld [vmem:[#allocation4 + $0xa8] sm:$0xf]
    %v159 = vld [vmem:[#allocation4 + $0xac] sm:$0xf]
    %v160 = vld [vmem:[#allocation4 + $0xb0] sm:$0xf]
    %v161 = vld [vmem:[#allocation4 + $0xb4] sm:$0xf]
    %v162 = vld [vmem:[#allocation4 + $0xb8] sm:$0xf]
    %v163 = vld [vmem:[#allocation4 + $0xbc] sm:$0xf]
    %v164 = vld [vmem:[#allocation4 + $0xc0] sm:$0xf]
    %v165 = vld [vmem:[#allocation4 + $0xc4] sm:$0xf]
    %v166 = vld [vmem:[#allocation4 + $0xc8] sm:$0xf]
    %v167 = vld [vmem:[#allocation4 + $0xcc] sm:$0xf]
    %v168 = vld [vmem:[#allocation4 + $0xd0] sm:$0xf]
    %v169 = vld [vmem:[#allocation4 + $0xd4] sm:$0xf]
    %v170 = vld [vmem:[#allocation4 + $0xd8] sm:$0xf]
    %v171 = vld [vmem:[#allocation4 + $0xdc] sm:$0xf]
    %v172 = vld [vmem:[#allocation4 + $0xe0] sm:$0xf]
    %v173 = vld [vmem:[#allocation4 + $0xe4] sm:$0xf]
    %v174 = vld [vmem:[#allocation4 + $0xe8] sm:$0xf]
    %v175 = vld [vmem:[#allocation4 + $0xec] sm:$0xf]
    %v176 = vld [vmem:[#allocation4 + $0xf0] sm:$0xf]
    %v177 = vld [vmem:[#allocation4 + $0xf4] sm:$0xf]
    %v178 = vld [vmem:[#allocation4 + $0xf8] sm:$0xf]
    %v179 = vld [vmem:[#allocation4 + $0xfc] sm:$0xf]
    %v180 = vld [vmem:[#allocation4 + $0x100] sm:$0xf]
    %v181 = vld [vmem:[#allocation4 + $0x104] sm:$0xf]
    %v182 = vld [vmem:[#allocation4 + $0x108] sm:$0xf]
    %v183 = vld [vmem:[#allocation4 + $0x10c] sm:$0xf]
    %v184 = vld [vmem:[#allocation4 + $0x110] sm:$0xf]
    %v185 = vld [vmem:[#allocation4 + $0x114] sm:$0xf]
    %v186 = vld [vmem:[#allocation4 + $0x118] sm:$0xf]
    %v187 = vld [vmem:[#allocation4 + $0x11c] sm:$0xf]
    %v188 = vld [vmem:[#allocation4 + $0x120] sm:$0xf]
    %v189 = vld [vmem:[#allocation4 + $0x124] sm:$0xf]
    %v190 = vld [vmem:[#allocation4 + $0x128] sm:$0xf]
    %v191 = vld [vmem:[#allocation4 + $0x12c] sm:$0xf]
    %v192 = vld [vmem:[#allocation4 + $0x130] sm:$0xf]
    %v193 = vld [vmem:[#allocation4 + $0x134] sm:$0xf]
    %v194 = vld [vmem:[#allocation4 + $0x138] sm:$0xf]
    %v195 = vld [vmem:[#allocation4 + $0x13c] sm:$0xf]
    %v196 = vld [vmem:[#allocation4 + $0x140] sm:$0xf]
    %v197 = vld [vmem:[#allocation4 + $0x144] sm:$0xf]
    %v198 = vld [vmem:[#allocation4 + $0x148] sm:$0xf]
    %v199 = vld [vmem:[#allocation4 + $0x14c] sm:$0xf]
    %v200 = vld [vmem:[#allocation4 + $0x150] sm:$0xf]
    %v201 = vld [vmem:[#allocation4 + $0x154] sm:$0xf]
    %v202 = vld [vmem:[#allocation4 + $0x158] sm:$0xf]
    %v203 = vld [vmem:[#allocation4 + $0x15c] sm:$0xf]
    %v204 = vld [vmem:[#allocation4 + $0x160] sm:$0xf]
    %v205 = vld [vmem:[#allocation4 + $0x164] sm:$0xf]
    %v206 = vld [vmem:[#allocation4 + $0x168] sm:$0xf]
    %v207 = vld [vmem:[#allocation4 + $0x16c] sm:$0xf]
    %v208 = vld [vmem:[#allocation4 + $0x170] sm:$0xf]
    %v209 = vld [vmem:[#allocation4 + $0x174] sm:$0xf]
    %v210 = vld [vmem:[#allocation4 + $0x178] sm:$0xf]
    %v211 = vld [vmem:[#allocation4 + $0x17c] sm:$0xf]
    %v212 = vld [vmem:[#allocation4 + $0x180] sm:$0xf]
    %v213 = vld [vmem:[#allocation4 + $0x184] sm:$0xf]
    %v214 = vld [vmem:[#allocation4 + $0x188] sm:$0xf]
    %v215 = vld [vmem:[#allocation4 + $0x18c] sm:$0xf]
    %v216 = vld [vmem:[#allocation4 + $0x190] sm:$0xf]
    %v217 = vld [vmem:[#allocation4 + $0x194] sm:$0xf]
    %v218 = vld [vmem:[#allocation4 + $0x198] sm:$0xf]
    %v219 = vld [vmem:[#allocation4 + $0x19c] sm:$0xf]
    %v220 = vld [vmem:[#allocation4 + $0x1a0] sm:$0xf]
    %v221 = vld [vmem:[#allocation4 + $0x1a4] sm:$0xf]
    %v222 = vld [vmem:[#allocation4 + $0x1a8] sm:$0xf]
    %v223 = vld [vmem:[#allocation4 + $0x1ac] sm:$0xf]
    %v224 = vld [vmem:[#allocation4 + $0x1b0] sm:$0xf]
    %v225 = vld [vmem:[#allocation4 + $0x1b4] sm:$0xf]
    %v226 = vld [vmem:[#allocation4 + $0x1b8] sm:$0xf]
    %v227 = vld [vmem:[#allocation4 + $0x1bc] sm:$0xf]
    %v228 = vld [vmem:[#allocation4 + $0x1c0] sm:$0xf]
    %v229 = vld [vmem:[#allocation4 + $0x1c4] sm:$0xf]
    %v230 = vld [vmem:[#allocation4 + $0x1c8] sm:$0xf]
    %v231 = vld [vmem:[#allocation4 + $0x1cc] sm:$0xf]
    %v232 = vld [vmem:[#allocation4 + $0x1d0] sm:$0xf]
    %v233 = vld [vmem:[#allocation4 + $0x1d4] sm:$0xf]
    %v234 = vld [vmem:[#allocation4 + $0x1d8] sm:$0xf]
    %v235 = vld [vmem:[#allocation4 + $0x1dc] sm:$0xf]
    %v236 = vld [vmem:[#allocation4 + $0x1e0] sm:$0xf]
    %v237 = vld [vmem:[#allocation4 + $0x1e4] sm:$0xf]
    %v238 = vld [vmem:[#allocation4 + $0x1e8] sm:$0xf]
    %v239 = vld [vmem:[#allocation4 + $0x1ec] sm:$0xf]
    %v240 = vld [vmem:[#allocation4 + $0x1f0] sm:$0xf]
    %v241 = vld [vmem:[#allocation4 + $0x1f4] sm:$0xf]
    %v242 = vld [vmem:[#allocation4 + $0x1f8] sm:$0xf]
    %v243 = vld [vmem:[#allocation4 + $0x1fc] sm:$0xf]
    %v244 = vld [vmem:[#allocation4 + $0x200] sm:$0xf]
    %v245 = vld [vmem:[#allocation4 + $0x204] sm:$0xf]
    %v246 = vld [vmem:[#allocation4 + $0x208] sm:$0xf]
    %v247 = vld [vmem:[#allocation4 + $0x20c] sm:$0xf]
    %v248 = vld [vmem:[#allocation4 + $0x210] sm:$0xf]
    %v249 = vld [vmem:[#allocation4 + $0x214] sm:$0xf]
    %v250 = vld [vmem:[#allocation4 + $0x218] sm:$0xf]
    %v251 = vld [vmem:[#allocation4 + $0x21c] sm:$0xf]
    %v252 = vld [vmem:[#allocation4 + $0x220] sm:$0xf]
    %v253 = vld [vmem:[#allocation4 + $0x224] sm:$0xf]
    %v254 = vld [vmem:[#allocation4 + $0x228] sm:$0xf]
    %v255 = vld [vmem:[#allocation4 + $0x22c] sm:$0xf]
    %v256 = vld [vmem:[#allocation4 + $0x230] sm:$0xf]
    %v257 = vld [vmem:[#allocation4 + $0x234] sm:$0xf]
    %v258 = vld [vmem:[#allocation4 + $0x238] sm:$0xf]
    %v259 = vld [vmem:[#allocation4 + $0x23c] sm:$0xf]
    %v260 = vld [vmem:[#allocation4 + $0x240] sm:$0xf]
    %v261 = vld [vmem:[#allocation4 + $0x244] sm:$0xf]
    %v262 = vld [vmem:[#allocation4 + $0x248] sm:$0xf]
    %v263 = vld [vmem:[#allocation4 + $0x24c] sm:$0xf]
    %v264 = vld [vmem:[#allocation4 + $0x250] sm:$0xf]
    %v265 = vld [vmem:[#allocation4 + $0x254] sm:$0xf]
    %v266 = vld [vmem:[#allocation4 + $0x258] sm:$0xf]
    %v267 = vld [vmem:[#allocation4 + $0x25c] sm:$0xf]
    %v268 = vld [vmem:[#allocation4 + $0x260] sm:$0xf]
    %v269 = vld [vmem:[#allocation4 + $0x264] sm:$0xf]
    %v270 = vld [vmem:[#allocation4 + $0x268] sm:$0xf]
    %v271 = vld [vmem:[#allocation4 + $0x26c] sm:$0xf]
    %v272 = vld [vmem:[#allocation4 + $0x270] sm:$0xf]
    %v273 = vld [vmem:[#allocation4 + $0x274] sm:$0xf]
    %v274 = vld [vmem:[#allocation4 + $0x278] sm:$0xf]
    %v275 = vld [vmem:[#allocation4 + $0x27c] sm:$0xf]
    %v276 = vld [vmem:[#allocation4 + $0x280] sm:$0xf]
    %v277 = vld [vmem:[#allocation4 + $0x284] sm:$0xf]
    %v278 = vld [vmem:[#allocation4 + $0x288] sm:$0xf]
    %v279 = vld [vmem:[#allocation4 + $0x28c] sm:$0xf]
    %v280 = vld [vmem:[#allocation4 + $0x290] sm:$0xf]
    %v281 = vld [vmem:[#allocation4 + $0x294] sm:$0xf]
    %v282 = vld [vmem:[#allocation4 + $0x298] sm:$0xf]
    %v283 = vld [vmem:[#allocation4 + $0x29c] sm:$0xf]
    %v284 = vld [vmem:[#allocation4 + $0x2a0] sm:$0xf]
    %v285 = vld [vmem:[#allocation4 + $0x2a4] sm:$0xf]
    %v286 = vld [vmem:[#allocation4 + $0x2a8] sm:$0xf]
    %v287 = vld [vmem:[#allocation4 + $0x2ac] sm:$0xf]
    %v288 = vld [vmem:[#allocation4 + $0x2b0] sm:$0xf]
    %v289 = vld [vmem:[#allocation4 + $0x2b4] sm:$0xf]
    %v290 = vld [vmem:[#allocation4 + $0x2b8] sm:$0xf]
    %v291 = vld [vmem:[#allocation4 + $0x2bc] sm:$0xf]
    %v292 = vld [vmem:[#allocation4 + $0x2c0] sm:$0xf]
    %v293 = vld [vmem:[#allocation4 + $0x2c4] sm:$0xf]
    %v294 = vld [vmem:[#allocation4 + $0x2c8] sm:$0xf]
    %v295 = vld [vmem:[#allocation4 + $0x2cc] sm:$0xf]
    %v296 = vld [vmem:[#allocation4 + $0x2d0] sm:$0xf]
    %v297 = vld [vmem:[#allocation4 + $0x2d4] sm:$0xf]
    %v298 = vld [vmem:[#allocation4 + $0x2d8] sm:$0xf]
    %v299 = vld [vmem:[#allocation4 + $0x2dc] sm:$0xf]
    %v300 = vld [vmem:[#allocation4 + $0x2e0] sm:$0xf]
    %v301 = vld [vmem:[#allocation4 + $0x2e4] sm:$0xf]
    %v302 = vld [vmem:[#allocation4 + $0x2e8] sm:$0xf]
    %v303 = vld [vmem:[#allocation4 + $0x2ec] sm:$0xf]
    %v304 = vld [vmem:[#allocation4 + $0x2f0] sm:$0xf]
    %v305 = vld [vmem:[#allocation4 + $0x2f4] sm:$0xf]
    %v306 = vld [vmem:[#allocation4 + $0x2f8] sm:$0xf]
    %v307 = vld [vmem:[#allocation4 + $0x2fc] sm:$0xf]
    %v308 = vld [vmem:[#allocation4 + $0x300] sm:$0xf]
    %v309 = vld [vmem:[#allocation4 + $0x304] sm:$0xf]
    %v310 = vld [vmem:[#allocation4 + $0x308] sm:$0xf]
    %v311 = vld [vmem:[#allocation4 + $0x30c] sm:$0xf]
    %v312 = vld [vmem:[#allocation4 + $0x310] sm:$0xf]
    %v313 = vld [vmem:[#allocation4 + $0x314] sm:$0xf]
    %v314 = vld [vmem:[#allocation4 + $0x318] sm:$0xf]
    %v315 = vld [vmem:[#allocation4 + $0x31c] sm:$0xf]
    %v316 = vld [vmem:[#allocation4 + $0x320] sm:$0xf]
    %v317 = vld [vmem:[#allocation4 + $0x324] sm:$0xf]
    %v318 = vld [vmem:[#allocation4 + $0x328] sm:$0xf]
    %v319 = vld [vmem:[#allocation4 + $0x32c] sm:$0xf]
    %v320 = vld [vmem:[#allocation4 + $0x330] sm:$0xf]
    %v321 = vld [vmem:[#allocation4 + $0x334] sm:$0xf]
    %v322 = vld [vmem:[#allocation4 + $0x338] sm:$0xf]
    %v323 = vld [vmem:[#allocation4 + $0x33c] sm:$0xf]
    %v324 = vld [vmem:[#allocation4 + $0x340] sm:$0xf]
    %v325 = vld [vmem:[#allocation4 + $0x344] sm:$0xf]
    %v326 = vld [vmem:[#allocation4 + $0x348] sm:$0xf]
    %v327 = vld [vmem:[#allocation4 + $0x34c] sm:$0xf]
    %v328 = vld [vmem:[#allocation4 + $0x350] sm:$0xf]
    %v329 = vld [vmem:[#allocation4 + $0x354] sm:$0xf]
    %v330 = vld [vmem:[#allocation4 + $0x358] sm:$0xf]
    %v331 = vld [vmem:[#allocation4 + $0x35c] sm:$0xf]
    %v332 = vld [vmem:[#allocation4 + $0x360] sm:$0xf]
    %v333 = vld [vmem:[#allocation4 + $0x364] sm:$0xf]
    %v334 = vld [vmem:[#allocation4 + $0x368] sm:$0xf]
    %v335 = vld [vmem:[#allocation4 + $0x36c] sm:$0xf]
    %v336 = vld [vmem:[#allocation4 + $0x370] sm:$0xf]
    %v337 = vld [vmem:[#allocation4 + $0x374] sm:$0xf]
    %v338 = vld [vmem:[#allocation4 + $0x378] sm:$0xf]
    %v339 = vld [vmem:[#allocation4 + $0x37c] sm:$0xf]
    %v340 = vld [vmem:[#allocation4 + $0x380] sm:$0xf]
    %v341 = vld [vmem:[#allocation4 + $0x384] sm:$0xf]
    %v342 = vld [vmem:[#allocation4 + $0x388] sm:$0xf]
    %v343 = vld [vmem:[#allocation4 + $0x38c] sm:$0xf]
    %v344 = vld [vmem:[#allocation4 + $0x390] sm:$0xf]
    %v345 = vld [vmem:[#allocation4 + $0x394] sm:$0xf]
    %v346 = vld [vmem:[#allocation4 + $0x398] sm:$0xf]
    %v347 = vld [vmem:[#allocation4 + $0x39c] sm:$0xf]
    %v348 = vld [vmem:[#allocation4 + $0x3a0] sm:$0xf]
    %v349 = vld [vmem:[#allocation4 + $0x3a4] sm:$0xf]
    %v350 = vld [vmem:[#allocation4 + $0x3a8] sm:$0xf]
    %v351 = vld [vmem:[#allocation4 + $0x3ac] sm:$0xf]
    %v352 = vld [vmem:[#allocation4 + $0x3b0] sm:$0xf]
    %v353 = vld [vmem:[#allocation4 + $0x3b4] sm:$0xf]
    %v354 = vld [vmem:[#allocation4 + $0x3b8] sm:$0xf]
    %v355 = vld [vmem:[#allocation4 + $0x3bc] sm:$0xf]
    %v356 = vld [vmem:[#allocation4 + $0x3c0] sm:$0xf]
    %v357 = vld [vmem:[#allocation4 + $0x3c4] sm:$0xf]
    %v358 = vld [vmem:[#allocation4 + $0x3c8] sm:$0xf]
    %v359 = vld [vmem:[#allocation4 + $0x3cc] sm:$0xf]
    %v360 = vld [vmem:[#allocation4 + $0x3d0] sm:$0xf]
    %v361 = vld [vmem:[#allocation4 + $0x3d4] sm:$0xf]
    %v362 = vld [vmem:[#allocation4 + $0x3d8] sm:$0xf]
    %v363 = vld [vmem:[#allocation4 + $0x3dc] sm:$0xf]
    %v364 = vld [vmem:[#allocation4 + $0x3e0] sm:$0xf]
    %v365 = vld [vmem:[#allocation4 + $0x3e4] sm:$0xf]
    %v366 = vld [vmem:[#allocation4 + $0x3e8] sm:$0xf]
    %v367 = vld [vmem:[#allocation4 + $0x3ec] sm:$0xf]
    %v368 = vld [vmem:[#allocation4 + $0x3f0] sm:$0xf]
    %v369 = vld [vmem:[#allocation4 + $0x3f4] sm:$0xf]
    %v370 = vld [vmem:[#allocation4 + $0x3f8] sm:$0xf]
    %v371 = vld [vmem:[#allocation4 + $0x3fc] sm:$0xf]
    %v372 = vld [vmem:[#allocation4 + $0x400] sm:$0xf]
    %v373 = vld [vmem:[#allocation4 + $0x404] sm:$0xf]
    %v374 = vld [vmem:[#allocation4 + $0x408] sm:$0xf]
    %v375 = vld [vmem:[#allocation4 + $0x40c] sm:$0xf]
    %v376 = vld [vmem:[#allocation4 + $0x410] sm:$0xf]
    %v377 = vld [vmem:[#allocation4 + $0x414] sm:$0xf]
    %v378 = vld [vmem:[#allocation4 + $0x418] sm:$0xf]
    %v379 = vld [vmem:[#allocation4 + $0x41c] sm:$0xf]
    %v380 = vld [vmem:[#allocation4 + $0x420] sm:$0xf]
    %v381 = vld [vmem:[#allocation4 + $0x424] sm:$0xf]
    %v382 = vld [vmem:[#allocation4 + $0x428] sm:$0xf]
    %v383 = vld [vmem:[#allocation4 + $0x42c] sm:$0xf]
    %v384 = vld [vmem:[#allocation4 + $0x430] sm:$0xf]
    %v385 = vld [vmem:[#allocation4 + $0x434] sm:$0xf]
    %v386 = vld [vmem:[#allocation4 + $0x438] sm:$0xf]
    %v387 = vld [vmem:[#allocation4 + $0x43c] sm:$0xf]
    %v388 = vld [vmem:[#allocation4 + $0x440] sm:$0xf]
    %v389 = vld [vmem:[#allocation4 + $0x444] sm:$0xf]
    %v390 = vld [vmem:[#allocation4 + $0x448] sm:$0xf]
    %v391 = vld [vmem:[#allocation4 + $0x44c] sm:$0xf]
    %v392 = vld [vmem:[#allocation4 + $0x450] sm:$0xf]
    %v393 = vld [vmem:[#allocation4 + $0x454] sm:$0xf]
    %v394 = vld [vmem:[#allocation4 + $0x458] sm:$0xf]
    %v395 = vld [vmem:[#allocation4 + $0x45c] sm:$0xf]
    %v396 = vld [vmem:[#allocation4 + $0x460] sm:$0xf]
    %v397 = vld [vmem:[#allocation4 + $0x464] sm:$0xf]
    %v398 = vld [vmem:[#allocation4 + $0x468] sm:$0xf]
    %v399 = vld [vmem:[#allocation4 + $0x46c] sm:$0xf]
    %v400 = vld [vmem:[#allocation4 + $0x470] sm:$0xf]
    %v401 = vld [vmem:[#allocation4 + $0x474] sm:$0xf]
    %v402 = vld [vmem:[#allocation4 + $0x478] sm:$0xf]
    %v403 = vld [vmem:[#allocation4 + $0x47c] sm:$0xf]
    %v404 = vld [vmem:[#allocation4 + $0x480] sm:$0xf]
    %v405 = vld [vmem:[#allocation4 + $0x484] sm:$0xf]
    %v406 = vld [vmem:[#allocation4 + $0x488] sm:$0xf]
    %v407 = vld [vmem:[#allocation4 + $0x48c] sm:$0xf]
    %v408 = vld [vmem:[#allocation4 + $0x490] sm:$0xf]
    %v409 = vld [vmem:[#allocation4 + $0x494] sm:$0xf]
    %v410 = vld [vmem:[#allocation4 + $0x498] sm:$0xf]
    %v411 = vld [vmem:[#allocation4 + $0x49c] sm:$0xf]
    %v412 = vld [vmem:[#allocation4 + $0x4a0] sm:$0xf]
    %v413 = vld [vmem:[#allocation4 + $0x4a4] sm:$0xf]
    %v414 = vld [vmem:[#allocation4 + $0x4a8] sm:$0xf]
    %v415 = vld [vmem:[#allocation4 + $0x4ac] sm:$0xf]
    %v416 = vld [vmem:[#allocation4 + $0x4b0] sm:$0xf]
    %v417 = vld [vmem:[#allocation4 + $0x4b4] sm:$0xf]
    %v418 = vld [vmem:[#allocation4 + $0x4b8] sm:$0xf]
    %v419 = vld [vmem:[#allocation4 + $0x4bc] sm:$0xf]
    %v420 = vld [vmem:[#allocation4 + $0x4c0] sm:$0xf]
    %v421 = vld [vmem:[#allocation4 + $0x4c4] sm:$0xf]
    %v422 = vld [vmem:[#allocation4 + $0x4c8] sm:$0xf]
    %v423 = vld [vmem:[#allocation4 + $0x4cc] sm:$0xf]
    %v424 = vld [vmem:[#allocation4 + $0x4d0] sm:$0xf]
    %v425 = vld [vmem:[#allocation4 + $0x4d4] sm:$0xf]
    %v426 = vld [vmem:[#allocation4 + $0x4d8] sm:$0xf]
    %v427 = vld [vmem:[#allocation4 + $0x4dc] sm:$0xf]
    %v428 = vld [vmem:[#allocation4 + $0x4e0] sm:$0xf]
    %v429 = vld [vmem:[#allocation4 + $0x4e4] sm:$0xf]
    %v430 = vld [vmem:[#allocation4 + $0x4e8] sm:$0xf]
    %v431 = vld [vmem:[#allocation4 + $0x4ec] sm:$0xf]
    %v432 = vld [vmem:[#allocation4 + $0x4f0] sm:$0xf]
    %v433 = vld [vmem:[#allocation4 + $0x4f4] sm:$0xf]
    %v434 = vld [vmem:[#allocation4 + $0x4f8] sm:$0xf]
    %v435 = vld [vmem:[#allocation4 + $0x4fc] sm:$0xf]
    %v436 = vld [vmem:[#allocation4 + $0x500] sm:$0xf]
    %v437 = vld [vmem:[#allocation4 + $0x504] sm:$0xf]
    %v438 = vld [vmem:[#allocation4 + $0x508] sm:$0xf]
    %v439 = vld [vmem:[#allocation4 + $0x50c] sm:$0xf]
    %v440 = vld [vmem:[#allocation4 + $0x510] sm:$0xf]
    %v441 = vld [vmem:[#allocation4 + $0x514] sm:$0xf]
    %v442 = vld [vmem:[#allocation4 + $0x518] sm:$0xf]
    %v443 = vld [vmem:[#allocation4 + $0x51c] sm:$0xf]
    %v444 = vld [vmem:[#allocation4 + $0x520] sm:$0xf]
    %v445 = vld [vmem:[#allocation4 + $0x524] sm:$0xf]
    %v446 = vld [vmem:[#allocation4 + $0x528] sm:$0xf]
    %v447 = vld [vmem:[#allocation4 + $0x52c] sm:$0xf]
    %v448 = vld [vmem:[#allocation4 + $0x530] sm:$0xf]
    %v449 = vld [vmem:[#allocation4 + $0x534] sm:$0xf]
    %v450 = vld [vmem:[#allocation4 + $0x538] sm:$0xf]
    %v451 = vld [vmem:[#allocation4 + $0x53c] sm:$0xf]
    %v452 = vld [vmem:[#allocation4 + $0x540] sm:$0xf]
    %v453 = vld [vmem:[#allocation4 + $0x544] sm:$0xf]
    %v454 = vld [vmem:[#allocation4 + $0x548] sm:$0xf]
    %v455 = vld [vmem:[#allocation4 + $0x54c] sm:$0xf]
    %v456 = vld [vmem:[#allocation4 + $0x550] sm:$0xf]
    %v457 = vld [vmem:[#allocation4 + $0x554] sm:$0xf]
    %v458 = vld [vmem:[#allocation4 + $0x558] sm:$0xf]
    %v459 = vld [vmem:[#allocation4 + $0x55c] sm:$0xf]
    %v460 = vld [vmem:[#allocation4 + $0x560] sm:$0xf]
    %v461 = vld [vmem:[#allocation4 + $0x564] sm:$0xf]
    %v462 = vld [vmem:[#allocation4 + $0x568] sm:$0xf]
    %v463 = vld [vmem:[#allocation4 + $0x56c] sm:$0xf]
    %v464 = vld [vmem:[#allocation4 + $0x570] sm:$0xf]
    %v465 = vld [vmem:[#allocation4 + $0x574] sm:$0xf]
    %v466 = vld [vmem:[#allocation4 + $0x578] sm:$0xf]
    %v467 = vld [vmem:[#allocation4 + $0x57c] sm:$0xf]
    %v468 = vld [vmem:[#allocation4 + $0x580] sm:$0xf]
    %v469 = vld [vmem:[#allocation4 + $0x584] sm:$0xf]
    %v470 = vld [vmem:[#allocation4 + $0x588] sm:$0xf]
    %v471 = vld [vmem:[#allocation4 + $0x58c] sm:$0xf]
    %v472 = vld [vmem:[#allocation4 + $0x590] sm:$0xf]
    %v473 = vld [vmem:[#allocation4 + $0x594] sm:$0xf]
    %v474 = vld [vmem:[#allocation4 + $0x598] sm:$0xf]
    %v475 = vld [vmem:[#allocation4 + $0x59c] sm:$0xf]
    %v476 = vld [vmem:[#allocation4 + $0x5a0] sm:$0xf]
    %v477 = vld [vmem:[#allocation4 + $0x5a4] sm:$0xf]
    %v478 = vld [vmem:[#allocation4 + $0x5a8] sm:$0xf]
    %v479 = vld [vmem:[#allocation4 + $0x5ac] sm:$0xf]
    %v480 = vld [vmem:[#allocation4 + $0x5b0] sm:$0xf]
    %v481 = vld [vmem:[#allocation4 + $0x5b4] sm:$0xf]
    %v482 = vld [vmem:[#allocation4 + $0x5b8] sm:$0xf]
    %v483 = vld [vmem:[#allocation4 + $0x5bc] sm:$0xf]
    %v484 = vld [vmem:[#allocation4 + $0x5c0] sm:$0xf]
    %v485 = vld [vmem:[#allocation4 + $0x5c4] sm:$0xf]
    %v486 = vld [vmem:[#allocation4 + $0x5c8] sm:$0xf]
    %v487 = vld [vmem:[#allocation4 + $0x5cc] sm:$0xf]
    %v488 = vld [vmem:[#allocation4 + $0x5d0] sm:$0xf]
    %v489 = vld [vmem:[#allocation4 + $0x5d4] sm:$0xf]
    %v490 = vld [vmem:[#allocation4 + $0x5d8] sm:$0xf]
    %v491 = vld [vmem:[#allocation4 + $0x5dc] sm:$0xf]
    %v492 = vld [vmem:[#allocation4 + $0x5e0] sm:$0xf]
    %v493 = vld [vmem:[#allocation4 + $0x5e4] sm:$0xf]
    %v494 = vld [vmem:[#allocation4 + $0x5e8] sm:$0xf]
    %v495 = vld [vmem:[#allocation4 + $0x5ec] sm:$0xf]
    %v496 = vld [vmem:[#allocation4 + $0x5f0] sm:$0xf]
    %v497 = vld [vmem:[#allocation4 + $0x5f4] sm:$0xf]
    %v498 = vld [vmem:[#allocation4 + $0x5f8] sm:$0xf]
    %v499 = vld [vmem:[#allocation4 + $0x5fc] sm:$0xf]
    %v500 = vld [vmem:[#allocation4 + $0x600] sm:$0xf]
    %v501 = vld [vmem:[#allocation4 + $0x604] sm:$0xf]
    %v502 = vld [vmem:[#allocation4 + $0x608] sm:$0xf]
    %v503 = vld [vmem:[#allocation4 + $0x60c] sm:$0xf]
    %v504 = vld [vmem:[#allocation4 + $0x610] sm:$0xf]
    %v505 = vld [vmem:[#allocation4 + $0x614] sm:$0xf]
    %v506 = vld [vmem:[#allocation4 + $0x618] sm:$0xf]
    %v507 = vld [vmem:[#allocation4 + $0x61c] sm:$0xf]
    %v508 = vld [vmem:[#allocation4 + $0x620] sm:$0xf]
    %v509 = vld [vmem:[#allocation4 + $0x624] sm:$0xf]
    %v510 = vld [vmem:[#allocation4 + $0x628] sm:$0xf]
    %v511 = vld [vmem:[#allocation4 + $0x62c] sm:$0xf]
    %v512 = vld [vmem:[#allocation4 + $0x630] sm:$0xf]
    %v513 = vld [vmem:[#allocation4 + $0x634] sm:$0xf]
    %v514 = vld [vmem:[#allocation4 + $0x638] sm:$0xf]
    %v515 = vld [vmem:[#allocation4 + $0x63c] sm:$0x7]
    %v516 = vld [vmem:[%s2] sm:$0x1]
    %v518 = vlaneseq
    %v519 = vshrl.u32 %v518, 7
    %v520 = vsub.s32 0, %v519
    %v521 = vrot.slane %v516, %v520
    %v923 = vunpack.c.l.b16 %v116
    %v924 = vunpack.c.l.b16 %v117
    %v925 = vunpack.c.l.b16 %v118
    %v926 = vunpack.c.l.b16 %v119
    %v927 = vunpack.c.l.b16 %v120
    %v928 = vunpack.c.l.b16 %v121
    %v929 = vunpack.c.l.b16 %v122
    %v930 = vunpack.c.l.b16 %v123
    %v931 = vunpack.c.l.b16 %v124
    %v932 = vunpack.c.l.b16 %v125
    %v933 = vunpack.c.l.b16 %v126
    %v934 = vunpack.c.l.b16 %v127
    %v935 = vunpack.c.l.b16 %v128
    %v936 = vunpack.c.l.b16 %v129
    %v937 = vunpack.c.l.b16 %v130
    %v938 = vunpack.c.l.b16 %v131
    %v939 = vunpack.c.l.b16 %v132
    %v940 = vunpack.c.l.b16 %v133
    %v941 = vunpack.c.l.b16 %v134
    %v942 = vunpack.c.l.b16 %v135
    %v943 = vunpack.c.l.b16 %v136
    %v944 = vunpack.c.l.b16 %v137
    %v945 = vunpack.c.l.b16 %v138
    %v946 = vunpack.c.l.b16 %v139
    %v947 = vunpack.c.l.b16 %v140
    %v948 = vunpack.c.l.b16 %v141
    %v949 = vunpack.c.l.b16 %v142
    %v950 = vunpack.c.l.b16 %v143
    %v951 = vunpack.c.l.b16 %v144
    %v952 = vunpack.c.l.b16 %v145
    %v953 = vunpack.c.l.b16 %v146
    %v954 = vunpack.c.l.b16 %v147
    %v955 = vunpack.c.l.b16 %v148
    %v956 = vunpack.c.l.b16 %v149
    %v957 = vunpack.c.l.b16 %v150
    %v958 = vunpack.c.l.b16 %v151
    %v959 = vunpack.c.l.b16 %v152
    %v960 = vunpack.c.l.b16 %v153
    %v961 = vunpack.c.l.b16 %v154
    %v962 = vunpack.c.l.b16 %v155
    %v963 = vunpack.c.l.b16 %v156
    %v964 = vunpack.c.l.b16 %v157
    %v965 = vunpack.c.l.b16 %v158
    %v966 = vunpack.c.l.b16 %v159
    %v967 = vunpack.c.l.b16 %v160
    %v968 = vunpack.c.l.b16 %v161
    %v969 = vunpack.c.l.b16 %v162
    %v970 = vunpack.c.l.b16 %v163
    %v971 = vunpack.c.l.b16 %v164
    %v972 = vunpack.c.l.b16 %v165
    %v973 = vunpack.c.l.b16 %v166
    %v974 = vunpack.c.l.b16 %v167
    %v975 = vunpack.c.l.b16 %v168
    %v976 = vunpack.c.l.b16 %v169
    %v977 = vunpack.c.l.b16 %v170
    %v978 = vunpack.c.l.b16 %v171
    %v979 = vunpack.c.l.b16 %v172
    %v980 = vunpack.c.l.b16 %v173
    %v981 = vunpack.c.l.b16 %v174
    %v982 = vunpack.c.l.b16 %v175
    %v983 = vunpack.c.l.b16 %v176
    %v984 = vunpack.c.l.b16 %v177
    %v985 = vunpack.c.l.b16 %v178
    %v986 = vunpack.c.l.b16 %v179
    %v987 = vunpack.c.l.b16 %v180
    %v988 = vunpack.c.l.b16 %v181
    %v989 = vunpack.c.l.b16 %v182
    %v990 = vunpack.c.l.b16 %v183
    %v991 = vunpack.c.l.b16 %v184
    %v992 = vunpack.c.l.b16 %v185
    %v993 = vunpack.c.l.b16 %v186
    %v994 = vunpack.c.l.b16 %v187
    %v995 = vunpack.c.l.b16 %v188
    %v996 = vunpack.c.l.b16 %v189
    %v997 = vunpack.c.l.b16 %v190
    %v998 = vunpack.c.l.b16 %v191
    %v999 = vunpack.c.l.b16 %v192
    %v1000 = vunpack.c.l.b16 %v193
    %v1001 = vunpack.c.l.b16 %v194
    %v1002 = vunpack.c.l.b16 %v195
    %v1003 = vunpack.c.l.b16 %v196
    %v1004 = vunpack.c.l.b16 %v197
    %v1005 = vunpack.c.l.b16 %v198
    %v1006 = vunpack.c.l.b16 %v199
    %v1007 = vunpack.c.l.b16 %v200
    %v1008 = vunpack.c.l.b16 %v201
    %v1009 = vunpack.c.l.b16 %v202
    %v1010 = vunpack.c.l.b16 %v203
    %v1011 = vunpack.c.l.b16 %v204
    %v1012 = vunpack.c.l.b16 %v205
    %v1013 = vunpack.c.l.b16 %v206
    %v1014 = vunpack.c.l.b16 %v207
    %v1015 = vunpack.c.l.b16 %v208
    %v1016 = vunpack.c.l.b16 %v209
    %v1017 = vunpack.c.l.b16 %v210
    %v1018 = vunpack.c.l.b16 %v211
    %v1019 = vunpack.c.l.b16 %v212
    %v1020 = vunpack.c.l.b16 %v213
    %v1021 = vunpack.c.l.b16 %v214
    %v1022 = vunpack.c.l.b16 %v215
    %v1023 = vunpack.c.l.b16 %v216
    %v1024 = vunpack.c.l.b16 %v217
    %v1025 = vunpack.c.l.b16 %v218
    %v1026 = vunpack.c.l.b16 %v219
    %v1027 = vunpack.c.l.b16 %v220
    %v1028 = vunpack.c.l.b16 %v221
    %v1029 = vunpack.c.l.b16 %v222
    %v1030 = vunpack.c.l.b16 %v223
    %v1031 = vunpack.c.l.b16 %v224
    %v1032 = vunpack.c.l.b16 %v225
    %v1033 = vunpack.c.l.b16 %v226
    %v1034 = vunpack.c.l.b16 %v227
    %v1035 = vunpack.c.l.b16 %v228
    %v1036 = vunpack.c.l.b16 %v229
    %v1037 = vunpack.c.l.b16 %v230
    %v1038 = vunpack.c.l.b16 %v231
    %v1039 = vunpack.c.l.b16 %v232
    %v1040 = vunpack.c.l.b16 %v233
    %v1041 = vunpack.c.l.b16 %v234
    %v1042 = vunpack.c.l.b16 %v235
    %v1043 = vunpack.c.l.b16 %v236
    %v1044 = vunpack.c.l.b16 %v237
    %v1045 = vunpack.c.l.b16 %v238
    %v1046 = vunpack.c.l.b16 %v239
    %v1047 = vunpack.c.l.b16 %v240
    %v1048 = vunpack.c.l.b16 %v241
    %v1049 = vunpack.c.l.b16 %v242
    %v1050 = vunpack.c.l.b16 %v243
    %v1051 = vunpack.c.l.b16 %v244
    %v1052 = vunpack.c.l.b16 %v245
    %v1053 = vunpack.c.l.b16 %v246
    %v1054 = vunpack.c.l.b16 %v247
    %v1055 = vunpack.c.l.b16 %v248
    %v1056 = vunpack.c.l.b16 %v249
    %v1057 = vunpack.c.l.b16 %v250
    %v1058 = vunpack.c.l.b16 %v251
    %v1059 = vunpack.c.l.b16 %v252
    %v1060 = vunpack.c.l.b16 %v253
    %v1061 = vunpack.c.l.b16 %v254
    %v1062 = vunpack.c.l.b16 %v255
    %v1063 = vunpack.c.l.b16 %v256
    %v1064 = vunpack.c.l.b16 %v257
    %v1065 = vunpack.c.l.b16 %v258
    %v1066 = vunpack.c.l.b16 %v259
    %v1067 = vunpack.c.l.b16 %v260
    %v1068 = vunpack.c.l.b16 %v261
    %v1069 = vunpack.c.l.b16 %v262
    %v1070 = vunpack.c.l.b16 %v263
    %v1071 = vunpack.c.l.b16 %v264
    %v1072 = vunpack.c.l.b16 %v265
    %v1073 = vunpack.c.l.b16 %v266
    %v1074 = vunpack.c.l.b16 %v267
    %v1075 = vunpack.c.l.b16 %v268
    %v1076 = vunpack.c.l.b16 %v269
    %v1077 = vunpack.c.l.b16 %v270
    %v1078 = vunpack.c.l.b16 %v271
    %v1079 = vunpack.c.l.b16 %v272
    %v1080 = vunpack.c.l.b16 %v273
    %v1081 = vunpack.c.l.b16 %v274
    %v1082 = vunpack.c.l.b16 %v275
    %v1083 = vunpack.c.l.b16 %v276
    %v1084 = vunpack.c.l.b16 %v277
    %v1085 = vunpack.c.l.b16 %v278
    %v1086 = vunpack.c.l.b16 %v279
    %v1087 = vunpack.c.l.b16 %v280
    %v1088 = vunpack.c.l.b16 %v281
    %v1089 = vunpack.c.l.b16 %v282
    %v1090 = vunpack.c.l.b16 %v283
    %v1091 = vunpack.c.l.b16 %v284
    %v1092 = vunpack.c.l.b16 %v285
    %v1093 = vunpack.c.l.b16 %v286
    %v1094 = vunpack.c.l.b16 %v287
    %v1095 = vunpack.c.l.b16 %v288
    %v1096 = vunpack.c.l.b16 %v289
    %v1097 = vunpack.c.l.b16 %v290
    %v1098 = vunpack.c.l.b16 %v291
    %v1099 = vunpack.c.l.b16 %v292
    %v1100 = vunpack.c.l.b16 %v293
    %v1101 = vunpack.c.l.b16 %v294
    %v1102 = vunpack.c.l.b16 %v295
    %v1103 = vunpack.c.l.b16 %v296
    %v1104 = vunpack.c.l.b16 %v297
    %v1105 = vunpack.c.l.b16 %v298
    %v1106 = vunpack.c.l.b16 %v299
    %v1107 = vunpack.c.l.b16 %v300
    %v1108 = vunpack.c.l.b16 %v301
    %v1109 = vunpack.c.l.b16 %v302
    %v1110 = vunpack.c.l.b16 %v303
    %v1111 = vunpack.c.l.b16 %v304
    %v1112 = vunpack.c.l.b16 %v305
    %v1113 = vunpack.c.l.b16 %v306
    %v1114 = vunpack.c.l.b16 %v307
    %v1115 = vunpack.c.l.b16 %v308
    %v1116 = vunpack.c.l.b16 %v309
    %v1117 = vunpack.c.l.b16 %v310
    %v1118 = vunpack.c.l.b16 %v311
    %v1119 = vunpack.c.l.b16 %v312
    %v1120 = vunpack.c.l.b16 %v313
    %v1121 = vunpack.c.l.b16 %v314
    %v1122 = vunpack.c.l.b16 %v315
    %v1123 = vunpack.c.l.b16 %v316
    %v1124 = vunpack.c.l.b16 %v317
    %v1125 = vunpack.c.l.b16 %v318
    %v1126 = vunpack.c.l.b16 %v319
    %v1127 = vunpack.c.l.b16 %v320
    %v1128 = vunpack.c.l.b16 %v321
    %v1129 = vunpack.c.l.b16 %v322
    %v1130 = vunpack.c.l.b16 %v323
    %v1131 = vunpack.c.l.b16 %v324
    %v1132 = vunpack.c.l.b16 %v325
    %v1133 = vunpack.c.l.b16 %v326
    %v1134 = vunpack.c.l.b16 %v327
    %v1135 = vunpack.c.l.b16 %v328
    %v1136 = vunpack.c.l.b16 %v329
    %v1137 = vunpack.c.l.b16 %v330
    %v1138 = vunpack.c.l.b16 %v331
    %v1139 = vunpack.c.l.b16 %v332
    %v1140 = vunpack.c.l.b16 %v333
    %v1141 = vunpack.c.l.b16 %v334
    %v1142 = vunpack.c.l.b16 %v335
    %v1143 = vunpack.c.l.b16 %v336
    %v1144 = vunpack.c.l.b16 %v337
    %v1145 = vunpack.c.l.b16 %v338
    %v1146 = vunpack.c.l.b16 %v339
    %v1147 = vunpack.c.l.b16 %v340
    %v1148 = vunpack.c.l.b16 %v341
    %v1149 = vunpack.c.l.b16 %v342
    %v1150 = vunpack.c.l.b16 %v343
    %v1151 = vunpack.c.l.b16 %v344
    %v1152 = vunpack.c.l.b16 %v345
    %v1153 = vunpack.c.l.b16 %v346
    %v1154 = vunpack.c.l.b16 %v347
    %v1155 = vunpack.c.l.b16 %v348
    %v1156 = vunpack.c.l.b16 %v349
    %v1157 = vunpack.c.l.b16 %v350
    %v1158 = vunpack.c.l.b16 %v351
    %v1159 = vunpack.c.l.b16 %v352
    %v1160 = vunpack.c.l.b16 %v353
    %v1161 = vunpack.c.l.b16 %v354
    %v1162 = vunpack.c.l.b16 %v355
    %v1163 = vunpack.c.l.b16 %v356
    %v1164 = vunpack.c.l.b16 %v357
    %v1165 = vunpack.c.l.b16 %v358
    %v1166 = vunpack.c.l.b16 %v359
    %v1167 = vunpack.c.l.b16 %v360
    %v1168 = vunpack.c.l.b16 %v361
    %v1169 = vunpack.c.l.b16 %v362
    %v1170 = vunpack.c.l.b16 %v363
    %v1171 = vunpack.c.l.b16 %v364
    %v1172 = vunpack.c.l.b16 %v365
    %v1173 = vunpack.c.l.b16 %v366
    %v1174 = vunpack.c.l.b16 %v367
    %v1175 = vunpack.c.l.b16 %v368
    %v1176 = vunpack.c.l.b16 %v369
    %v1177 = vunpack.c.l.b16 %v370
    %v1178 = vunpack.c.l.b16 %v371
    %v1179 = vunpack.c.l.b16 %v372
    %v1180 = vunpack.c.l.b16 %v373
    %v1181 = vunpack.c.l.b16 %v374
    %v1182 = vunpack.c.l.b16 %v375
    %v1183 = vunpack.c.l.b16 %v376
    %v1184 = vunpack.c.l.b16 %v377
    %v1185 = vunpack.c.l.b16 %v378
    %v1186 = vunpack.c.l.b16 %v379
    %v1187 = vunpack.c.l.b16 %v380
    %v1188 = vunpack.c.l.b16 %v381
    %v1189 = vunpack.c.l.b16 %v382
    %v1190 = vunpack.c.l.b16 %v383
    %v1191 = vunpack.c.l.b16 %v384
    %v1192 = vunpack.c.l.b16 %v385
    %v1193 = vunpack.c.l.b16 %v386
    %v1194 = vunpack.c.l.b16 %v387
    %v1195 = vunpack.c.l.b16 %v388
    %v1196 = vunpack.c.l.b16 %v389
    %v1197 = vunpack.c.l.b16 %v390
    %v1198 = vunpack.c.l.b16 %v391
    %v1199 = vunpack.c.l.b16 %v392
    %v1200 = vunpack.c.l.b16 %v393
    %v1201 = vunpack.c.l.b16 %v394
    %v1202 = vunpack.c.l.b16 %v395
    %v1203 = vunpack.c.l.b16 %v396
    %v1204 = vunpack.c.l.b16 %v397
    %v1205 = vunpack.c.l.b16 %v398
    %v1206 = vunpack.c.l.b16 %v399
    %v1207 = vunpack.c.l.b16 %v400
    %v1208 = vunpack.c.l.b16 %v401
    %v1209 = vunpack.c.l.b16 %v402
    %v1210 = vunpack.c.l.b16 %v403
    %v1211 = vunpack.c.l.b16 %v404
    %v1212 = vunpack.c.l.b16 %v405
    %v1213 = vunpack.c.l.b16 %v406
    %v1214 = vunpack.c.l.b16 %v407
    %v1215 = vunpack.c.l.b16 %v408
    %v1216 = vunpack.c.l.b16 %v409
    %v1217 = vunpack.c.l.b16 %v410
    %v1218 = vunpack.c.l.b16 %v411
    %v1219 = vunpack.c.l.b16 %v412
    %v1220 = vunpack.c.l.b16 %v413
    %v1221 = vunpack.c.l.b16 %v414
    %v1222 = vunpack.c.l.b16 %v415
    %v1223 = vunpack.c.l.b16 %v416
    %v1224 = vunpack.c.l.b16 %v417
    %v1225 = vunpack.c.l.b16 %v418
    %v1226 = vunpack.c.l.b16 %v419
    %v1227 = vunpack.c.l.b16 %v420
    %v1228 = vunpack.c.l.b16 %v421
    %v1229 = vunpack.c.l.b16 %v422
    %v1230 = vunpack.c.l.b16 %v423
    %v1231 = vunpack.c.l.b16 %v424
    %v1232 = vunpack.c.l.b16 %v425
    %v1233 = vunpack.c.l.b16 %v426
    %v1234 = vunpack.c.l.b16 %v427
    %v1235 = vunpack.c.l.b16 %v428
    %v1236 = vunpack.c.l.b16 %v429
    %v1237 = vunpack.c.l.b16 %v430
    %v1238 = vunpack.c.l.b16 %v431
    %v1239 = vunpack.c.l.b16 %v432
    %v1240 = vunpack.c.l.b16 %v433
    %v1241 = vunpack.c.l.b16 %v434
    %v1242 = vunpack.c.l.b16 %v435
    %v1243 = vunpack.c.l.b16 %v436
    %v1244 = vunpack.c.l.b16 %v437
    %v1245 = vunpack.c.l.b16 %v438
    %v1246 = vunpack.c.l.b16 %v439
    %v1247 = vunpack.c.l.b16 %v440
    %v1248 = vunpack.c.l.b16 %v441
    %v1249 = vunpack.c.l.b16 %v442
    %v1250 = vunpack.c.l.b16 %v443
    %v1251 = vunpack.c.l.b16 %v444
    %v1252 = vunpack.c.l.b16 %v445
    %v1253 = vunpack.c.l.b16 %v446
    %v1254 = vunpack.c.l.b16 %v447
    %v1255 = vunpack.c.l.b16 %v448
    %v1256 = vunpack.c.l.b16 %v449
    %v1257 = vunpack.c.l.b16 %v450
    %v1258 = vunpack.c.l.b16 %v451
    %v1259 = vunpack.c.l.b16 %v452
    %v1260 = vunpack.c.l.b16 %v453
    %v1261 = vunpack.c.l.b16 %v454
    %v1262 = vunpack.c.l.b16 %v455
    %v1263 = vunpack.c.l.b16 %v456
    %v1264 = vunpack.c.l.b16 %v457
    %v1265 = vunpack.c.l.b16 %v458
    %v1266 = vunpack.c.l.b16 %v459
    %v1267 = vunpack.c.l.b16 %v460
    %v1268 = vunpack.c.l.b16 %v461
    %v1269 = vunpack.c.l.b16 %v462
    %v1270 = vunpack.c.l.b16 %v463
    %v1271 = vunpack.c.l.b16 %v464
    %v1272 = vunpack.c.l.b16 %v465
    %v1273 = vunpack.c.l.b16 %v466
    %v1274 = vunpack.c.l.b16 %v467
    %v1275 = vunpack.c.l.b16 %v468
    %v1276 = vunpack.c.l.b16 %v469
    %v1277 = vunpack.c.l.b16 %v470
    %v1278 = vunpack.c.l.b16 %v471
    %v1279 = vunpack.c.l.b16 %v472
    %v1280 = vunpack.c.l.b16 %v473
    %v1281 = vunpack.c.l.b16 %v474
    %v1282 = vunpack.c.l.b16 %v475
    %v1283 = vunpack.c.l.b16 %v476
    %v1284 = vunpack.c.l.b16 %v477
    %v1285 = vunpack.c.l.b16 %v478
    %v1286 = vunpack.c.l.b16 %v479
    %v1287 = vunpack.c.l.b16 %v480
    %v1288 = vunpack.c.l.b16 %v481
    %v1289 = vunpack.c.l.b16 %v482
    %v1290 = vunpack.c.l.b16 %v483
    %v1291 = vunpack.c.l.b16 %v484
    %v1292 = vunpack.c.l.b16 %v485
    %v1293 = vunpack.c.l.b16 %v486
    %v1294 = vunpack.c.l.b16 %v487
    %v1295 = vunpack.c.l.b16 %v488
    %v1296 = vunpack.c.l.b16 %v489
    %v1297 = vunpack.c.l.b16 %v490
    %v1298 = vunpack.c.l.b16 %v491
    %v1299 = vunpack.c.l.b16 %v492
    %v1300 = vunpack.c.l.b16 %v493
    %v1301 = vunpack.c.l.b16 %v494
    %v1302 = vunpack.c.l.b16 %v495
    %v1303 = vunpack.c.l.b16 %v496
    %v1304 = vunpack.c.l.b16 %v497
    %v1305 = vunpack.c.l.b16 %v498
    %v1306 = vunpack.c.l.b16 %v499
    %v1307 = vunpack.c.l.b16 %v500
    %v1308 = vunpack.c.l.b16 %v501
    %v1309 = vunpack.c.l.b16 %v502
    %v1310 = vunpack.c.l.b16 %v503
    %v1311 = vunpack.c.l.b16 %v504
    %v1312 = vunpack.c.l.b16 %v505
    %v1313 = vunpack.c.l.b16 %v506
    %v1314 = vunpack.c.l.b16 %v507
    %v1315 = vunpack.c.l.b16 %v508
    %v1316 = vunpack.c.l.b16 %v509
    %v1317 = vunpack.c.l.b16 %v510
    %v1318 = vunpack.c.l.b16 %v511
    %v1319 = vunpack.c.l.b16 %v512
    %v1320 = vunpack.c.l.b16 %v513
    %v1321 = vunpack.c.l.b16 %v514
    %v1322 = vunpack.c.l.b16 %v515
    %v1323 = vpack.c.b16 %v924, %v923
    %v1324 = vpack.c.b16 %v926, %v925
    %v1325 = vpack.c.b16 %v928, %v927
    %v1326 = vpack.c.b16 %v930, %v929
    %v1327 = vpack.c.b16 %v932, %v931
    %v1328 = vpack.c.b16 %v934, %v933
    %v1329 = vpack.c.b16 %v936, %v935
    %v1330 = vpack.c.b16 %v938, %v937
    %v1331 = vpack.c.b16 %v940, %v939
    %v1332 = vpack.c.b16 %v942, %v941
    %v1333 = vpack.c.b16 %v944, %v943
    %v1334 = vpack.c.b16 %v946, %v945
    %v1335 = vpack.c.b16 %v948, %v947
    %v1336 = vpack.c.b16 %v950, %v949
    %v1337 = vpack.c.b16 %v952, %v951
    %v1338 = vpack.c.b16 %v954, %v953
    %v1339 = vpack.c.b16 %v956, %v955
    %v1340 = vpack.c.b16 %v958, %v957
    %v1341 = vpack.c.b16 %v960, %v959
    %v1342 = vpack.c.b16 %v962, %v961
    %v1343 = vpack.c.b16 %v964, %v963
    %v1344 = vpack.c.b16 %v966, %v965
    %v1345 = vpack.c.b16 %v968, %v967
    %v1346 = vpack.c.b16 %v970, %v969
    %v1347 = vpack.c.b16 %v972, %v971
    %v1348 = vpack.c.b16 %v974, %v973
    %v1349 = vpack.c.b16 %v976, %v975
    %v1350 = vpack.c.b16 %v978, %v977
    %v1351 = vpack.c.b16 %v980, %v979
    %v1352 = vpack.c.b16 %v982, %v981
    %v1353 = vpack.c.b16 %v984, %v983
    %v1354 = vpack.c.b16 %v986, %v985
    %v1355 = vpack.c.b16 %v988, %v987
    %v1356 = vpack.c.b16 %v990, %v989
    %v1357 = vpack.c.b16 %v992, %v991
    %v1358 = vpack.c.b16 %v994, %v993
    %v1359 = vpack.c.b16 %v996, %v995
    %v1360 = vpack.c.b16 %v998, %v997
    %v1361 = vpack.c.b16 %v1000, %v999
    %v1362 = vpack.c.b16 %v1002, %v1001
    %v1363 = vpack.c.b16 %v1004, %v1003
    %v1364 = vpack.c.b16 %v1006, %v1005
    %v1365 = vpack.c.b16 %v1008, %v1007
    %v1366 = vpack.c.b16 %v1010, %v1009
    %v1367 = vpack.c.b16 %v1012, %v1011
    %v1368 = vpack.c.b16 %v1014, %v1013
    %v1369 = vpack.c.b16 %v1016, %v1015
    %v1370 = vpack.c.b16 %v1018, %v1017
    %v1371 = vpack.c.b16 %v1020, %v1019
    %v1372 = vpack.c.b16 %v1022, %v1021
    %v1373 = vpack.c.b16 %v1024, %v1023
    %v1374 = vpack.c.b16 %v1026, %v1025
    %v1375 = vpack.c.b16 %v1028, %v1027
    %v1376 = vpack.c.b16 %v1030, %v1029
    %v1377 = vpack.c.b16 %v1032, %v1031
    %v1378 = vpack.c.b16 %v1034, %v1033
    %v1379 = vpack.c.b16 %v1036, %v1035
    %v1380 = vpack.c.b16 %v1038, %v1037
    %v1381 = vpack.c.b16 %v1040, %v1039
    %v1382 = vpack.c.b16 %v1042, %v1041
    %v1383 = vpack.c.b16 %v1044, %v1043
    %v1384 = vpack.c.b16 %v1046, %v1045
    %v1385 = vpack.c.b16 %v1048, %v1047
    %v1386 = vpack.c.b16 %v1050, %v1049
    %v1387 = vpack.c.b16 %v1052, %v1051
    %v1388 = vpack.c.b16 %v1054, %v1053
    %v1389 = vpack.c.b16 %v1056, %v1055
    %v1390 = vpack.c.b16 %v1058, %v1057
    %v1391 = vpack.c.b16 %v1060, %v1059
    %v1392 = vpack.c.b16 %v1062, %v1061
    %v1393 = vpack.c.b16 %v1064, %v1063
    %v1394 = vpack.c.b16 %v1066, %v1065
    %v1395 = vpack.c.b16 %v1068, %v1067
    %v1396 = vpack.c.b16 %v1070, %v1069
    %v1397 = vpack.c.b16 %v1072, %v1071
    %v1398 = vpack.c.b16 %v1074, %v1073
    %v1399 = vpack.c.b16 %v1076, %v1075
    %v1400 = vpack.c.b16 %v1078, %v1077
    %v1401 = vpack.c.b16 %v1080, %v1079
    %v1402 = vpack.c.b16 %v1082, %v1081
    %v1403 = vpack.c.b16 %v1084, %v1083
    %v1404 = vpack.c.b16 %v1086, %v1085
    %v1405 = vpack.c.b16 %v1088, %v1087
    %v1406 = vpack.c.b16 %v1090, %v1089
    %v1407 = vpack.c.b16 %v1092, %v1091
    %v1408 = vpack.c.b16 %v1094, %v1093
    %v1409 = vpack.c.b16 %v1096, %v1095
    %v1410 = vpack.c.b16 %v1098, %v1097
    %v1411 = vpack.c.b16 %v1100, %v1099
    %v1412 = vpack.c.b16 %v1102, %v1101
    %v1413 = vpack.c.b16 %v1104, %v1103
    %v1414 = vpack.c.b16 %v1106, %v1105
    %v1415 = vpack.c.b16 %v1108, %v1107
    %v1416 = vpack.c.b16 %v1110, %v1109
    %v1417 = vpack.c.b16 %v1112, %v1111
    %v1418 = vpack.c.b16 %v1114, %v1113
    %v1419 = vpack.c.b16 %v1116, %v1115
    %v1420 = vpack.c.b16 %v1118, %v1117
    %v1421 = vpack.c.b16 %v1120, %v1119
    %v1422 = vpack.c.b16 %v1122, %v1121
    %v1423 = vpack.c.b16 %v1124, %v1123
    %v1424 = vpack.c.b16 %v1126, %v1125
    %v1425 = vpack.c.b16 %v1128, %v1127
    %v1426 = vpack.c.b16 %v1130, %v1129
    %v1427 = vpack.c.b16 %v1132, %v1131
    %v1428 = vpack.c.b16 %v1134, %v1133
    %v1429 = vpack.c.b16 %v1136, %v1135
    %v1430 = vpack.c.b16 %v1138, %v1137
    %v1431 = vpack.c.b16 %v1140, %v1139
    %v1432 = vpack.c.b16 %v1142, %v1141
    %v1433 = vpack.c.b16 %v1144, %v1143
    %v1434 = vpack.c.b16 %v1146, %v1145
    %v1435 = vpack.c.b16 %v1148, %v1147
    %v1436 = vpack.c.b16 %v1150, %v1149
    %v1437 = vpack.c.b16 %v1152, %v1151
    %v1438 = vpack.c.b16 %v1154, %v1153
    %v1439 = vpack.c.b16 %v1156, %v1155
    %v1440 = vpack.c.b16 %v1158, %v1157
    %v1441 = vpack.c.b16 %v1160, %v1159
    %v1442 = vpack.c.b16 %v1162, %v1161
    %v1443 = vpack.c.b16 %v1164, %v1163
    %v1444 = vpack.c.b16 %v1166, %v1165
    %v1445 = vpack.c.b16 %v1168, %v1167
    %v1446 = vpack.c.b16 %v1170, %v1169
    %v1447 = vpack.c.b16 %v1172, %v1171
    %v1448 = vpack.c.b16 %v1174, %v1173
    %v1449 = vpack.c.b16 %v1176, %v1175
    %v1450 = vpack.c.b16 %v1178, %v1177
    %v1451 = vpack.c.b16 %v1180, %v1179
    %v1452 = vpack.c.b16 %v1182, %v1181
    %v1453 = vpack.c.b16 %v1184, %v1183
    %v1454 = vpack.c.b16 %v1186, %v1185
    %v1455 = vpack.c.b16 %v1188, %v1187
    %v1456 = vpack.c.b16 %v1190, %v1189
    %v1457 = vpack.c.b16 %v1192, %v1191
    %v1458 = vpack.c.b16 %v1194, %v1193
    %v1459 = vpack.c.b16 %v1196, %v1195
    %v1460 = vpack.c.b16 %v1198, %v1197
    %v1461 = vpack.c.b16 %v1200, %v1199
    %v1462 = vpack.c.b16 %v1202, %v1201
    %v1463 = vpack.c.b16 %v1204, %v1203
    %v1464 = vpack.c.b16 %v1206, %v1205
    %v1465 = vpack.c.b16 %v1208, %v1207
    %v1466 = vpack.c.b16 %v1210, %v1209
    %v1467 = vpack.c.b16 %v1212, %v1211
    %v1468 = vpack.c.b16 %v1214, %v1213
    %v1469 = vpack.c.b16 %v1216, %v1215
    %v1470 = vpack.c.b16 %v1218, %v1217
    %v1471 = vpack.c.b16 %v1220, %v1219
    %v1472 = vpack.c.b16 %v1222, %v1221
    %v1473 = vpack.c.b16 %v1224, %v1223
    %v1474 = vpack.c.b16 %v1226, %v1225
    %v1475 = vpack.c.b16 %v1228, %v1227
    %v1476 = vpack.c.b16 %v1230, %v1229
    %v1477 = vpack.c.b16 %v1232, %v1231
    %v1478 = vpack.c.b16 %v1234, %v1233
    %v1479 = vpack.c.b16 %v1236, %v1235
    %v1480 = vpack.c.b16 %v1238, %v1237
    %v1481 = vpack.c.b16 %v1240, %v1239
    %v1482 = vpack.c.b16 %v1242, %v1241
    %v1483 = vpack.c.b16 %v1244, %v1243
    %v1484 = vpack.c.b16 %v1246, %v1245
    %v1485 = vpack.c.b16 %v1248, %v1247
    %v1486 = vpack.c.b16 %v1250, %v1249
    %v1487 = vpack.c.b16 %v1252, %v1251
    %v1488 = vpack.c.b16 %v1254, %v1253
    %v1489 = vpack.c.b16 %v1256, %v1255
    %v1490 = vpack.c.b16 %v1258, %v1257
    %v1491 = vpack.c.b16 %v1260, %v1259
    %v1492 = vpack.c.b16 %v1262, %v1261
    %v1493 = vpack.c.b16 %v1264, %v1263
    %v1494 = vpack.c.b16 %v1266, %v1265
    %v1495 = vpack.c.b16 %v1268, %v1267
    %v1496 = vpack.c.b16 %v1270, %v1269
    %v1497 = vpack.c.b16 %v1272, %v1271
    %v1498 = vpack.c.b16 %v1274, %v1273
    %v1499 = vpack.c.b16 %v1276, %v1275
    %v1500 = vpack.c.b16 %v1278, %v1277
    %v1501 = vpack.c.b16 %v1280, %v1279
    %v1502 = vpack.c.b16 %v1282, %v1281
    %v1503 = vpack.c.b16 %v1284, %v1283
    %v1504 = vpack.c.b16 %v1286, %v1285
    %v1505 = vpack.c.b16 %v1288, %v1287
    %v1506 = vpack.c.b16 %v1290, %v1289
    %v1507 = vpack.c.b16 %v1292, %v1291
    %v1508 = vpack.c.b16 %v1294, %v1293
    %v1509 = vpack.c.b16 %v1296, %v1295
    %v1510 = vpack.c.b16 %v1298, %v1297
    %v1511 = vpack.c.b16 %v1300, %v1299
    %v1512 = vpack.c.b16 %v1302, %v1301
    %v1513 = vpack.c.b16 %v1304, %v1303
    %v1514 = vpack.c.b16 %v1306, %v1305
    %v1515 = vpack.c.b16 %v1308, %v1307
    %v1516 = vpack.c.b16 %v1310, %v1309
    %v1517 = vpack.c.b16 %v1312, %v1311
    %v1518 = vpack.c.b16 %v1314, %v1313
    %v1519 = vpack.c.b16 %v1316, %v1315
    %v1520 = vpack.c.b16 %v1318, %v1317
    %v1521 = vpack.c.b16 %v1320, %v1319
    %v1522 = vpack.c.b16 %v1322, %v1321
    %vm1722 = vcmask 1022976
    %v1724 = vsel %vm1722, %v115, 0
    %vm1726 = vcmask 1045504
    %vm1727 = vcmask 1046528
    %v1728 = vsel %vm1726, 4294967295, 65535
    %v1729 = vsel %vm1727, %v1728, 0
    %v1731 = vand.u32 %v1522, %v1729
    %1733 = vmatprep.subr.bf16.mxu0 0
    %1734 = vmatpush1.bf16.msra.mxu0 %v1330
    %1735 = vmatprep.subr.bf16.mxu0 0
    %1736 = vmatpush1.bf16.msra.mxu0 %v1329
    %1737 = vmatprep.subr.bf16.mxu0 0
    %1738 = vmatpush1.bf16.msra.mxu0 %v1328
    %1739 = vmatprep.subr.bf16.mxu0 0
    %1740 = vmatpush1.bf16.msra.mxu0 %v1327
    %1741 = vmatprep.subr.bf16.mxu0 0
    %1742 = vmatpush1.bf16.msra.mxu0 %v1326
    %1743 = vmatprep.subr.bf16.mxu0 0
    %1744 = vmatpush1.bf16.msra.mxu0 %v1325
    %1745 = vmatprep.subr.bf16.mxu0 0
    %1746 = vmatpush1.bf16.msra.mxu0 %v1324
    %1747 = vmatprep.subr.bf16.mxu0 0
    %1748 = vmatpush1.bf16.msra.mxu0 %v1323
    %1749 = vmatprep.subr.bf16.mxu0 0
    %1750 = vmatpush2.bf16.msra.mxu0 %v1338
    %1751 = vmatprep.subr.bf16.mxu0 0
    %1752 = vmatpush2.bf16.msra.mxu0 %v1337
    %1753 = vmatprep.subr.bf16.mxu0 0
    %1754 = vmatpush2.bf16.msra.mxu0 %v1336
    %1755 = vmatprep.subr.bf16.mxu0 0
    %1756 = vmatpush2.bf16.msra.mxu0 %v1335
    %1757 = vmatprep.subr.bf16.mxu0 0
    %1758 = vmatpush2.bf16.msra.mxu0 %v1334
    %1759 = vmatprep.subr.bf16.mxu0 0
    %1760 = vmatpush2.bf16.msra.mxu0 %v1333
    %1761 = vmatprep.subr.bf16.mxu0 0
    %1762 = vmatpush2.bf16.msra.mxu0 %v1332
    %1763 = vmatprep.subr.bf16.mxu0 0
    %1764 = vmatpush2.bf16.msra.mxu0 %v1331
    %1765 = vmatprep.mubr.bf16.mxu0 %v92
    %1766 = vmatmul.mubr.bf16.gmra.mxu0 %v91
    %v1767 = vpop.f32.mrf.mxu0
    %v1768 = vadd.f32 %v521, %v1767
    %v1769 = vpop.f32.mrf.mxu0
    %v1770 = vpop.f32.mrf.mxu0
    %v1771 = vpop.f32.mrf.mxu0
    %1772 = vdwg.mxu0
    %1773 = vmatprep.subr.bf16.mxu0 0
    %1774 = vmatpush1.bf16.msra.mxu0 %v1346
    %1775 = vmatprep.subr.bf16.mxu0 0
    %1776 = vmatpush1.bf16.msra.mxu0 %v1345
    %1777 = vmatprep.subr.bf16.mxu0 0
    %1778 = vmatpush1.bf16.msra.mxu0 %v1344
    %1779 = vmatprep.subr.bf16.mxu0 0
    %1780 = vmatpush1.bf16.msra.mxu0 %v1343
    %1781 = vmatprep.subr.bf16.mxu0 0
    %1782 = vmatpush1.bf16.msra.mxu0 %v1342
    %1783 = vmatprep.subr.bf16.mxu0 0
    %1784 = vmatpush1.bf16.msra.mxu0 %v1341
    %1785 = vmatprep.subr.bf16.mxu0 0
    %1786 = vmatpush1.bf16.msra.mxu0 %v1340
    %1787 = vmatprep.subr.bf16.mxu0 0
    %1788 = vmatpush1.bf16.msra.mxu0 %v1339
    %1789 = vmatprep.subr.bf16.mxu0 0
    %1790 = vmatpush2.bf16.msra.mxu0 %v1354
    %1791 = vmatprep.subr.bf16.mxu0 0
    %1792 = vmatpush2.bf16.msra.mxu0 %v1353
    %1793 = vmatprep.subr.bf16.mxu0 0
    %1794 = vmatpush2.bf16.msra.mxu0 %v1352
    %1795 = vmatprep.subr.bf16.mxu0 0
    %1796 = vmatpush2.bf16.msra.mxu0 %v1351
    %1797 = vmatprep.subr.bf16.mxu0 0
    %1798 = vmatpush2.bf16.msra.mxu0 %v1350
    %1799 = vmatprep.subr.bf16.mxu0 0
    %1800 = vmatpush2.bf16.msra.mxu0 %v1349
    %1801 = vmatprep.subr.bf16.mxu0 0
    %1802 = vmatpush2.bf16.msra.mxu0 %v1348
    %1803 = vmatprep.subr.bf16.mxu0 0
    %1804 = vmatpush2.bf16.msra.mxu0 %v1347
    %1805 = vmatprep.mubr.bf16.mxu0 %v94
    %1806 = vmatmul.mubr.bf16.gmra.mxu0 %v93
    %v1807 = vpop.f32.mrf.mxu0
    %v1808 = vadd.f32 %v1768, %v1807
    %v1809 = vpop.f32.mrf.mxu0
    %v1810 = vpop.f32.mrf.mxu0
    %v1811 = vpop.f32.mrf.mxu0
    %1812 = vdwg.mxu0
    %1813 = vmatprep.subr.bf16.mxu0 0
    %1814 = vmatpush1.bf16.msra.mxu0 %v1362
    %1815 = vmatprep.subr.bf16.mxu0 0
    %1816 = vmatpush1.bf16.msra.mxu0 %v1361
    %1817 = vmatprep.subr.bf16.mxu0 0
    %1818 = vmatpush1.bf16.msra.mxu0 %v1360
    %1819 = vmatprep.subr.bf16.mxu0 0
    %1820 = vmatpush1.bf16.msra.mxu0 %v1359
    %1821 = vmatprep.subr.bf16.mxu0 0
    %1822 = vmatpush1.bf16.msra.mxu0 %v1358
    %1823 = vmatprep.subr.bf16.mxu0 0
    %1824 = vmatpush1.bf16.msra.mxu0 %v1357
    %1825 = vmatprep.subr.bf16.mxu0 0
    %1826 = vmatpush1.bf16.msra.mxu0 %v1356
    %1827 = vmatprep.subr.bf16.mxu0 0
    %1828 = vmatpush1.bf16.msra.mxu0 %v1355
    %1829 = vmatprep.subr.bf16.mxu0 0
    %1830 = vmatpush2.bf16.msra.mxu0 %v1370
    %1831 = vmatprep.subr.bf16.mxu0 0
    %1832 = vmatpush2.bf16.msra.mxu0 %v1369
    %1833 = vmatprep.subr.bf16.mxu0 0
    %1834 = vmatpush2.bf16.msra.mxu0 %v1368
    %1835 = vmatprep.subr.bf16.mxu0 0
    %1836 = vmatpush2.bf16.msra.mxu0 %v1367
    %1837 = vmatprep.subr.bf16.mxu0 0
    %1838 = vmatpush2.bf16.msra.mxu0 %v1366
    %1839 = vmatprep.subr.bf16.mxu0 0
    %1840 = vmatpush2.bf16.msra.mxu0 %v1365
    %1841 = vmatprep.subr.bf16.mxu0 0
    %1842 = vmatpush2.bf16.msra.mxu0 %v1364
    %1843 = vmatprep.subr.bf16.mxu0 0
    %1844 = vmatpush2.bf16.msra.mxu0 %v1363
    %1845 = vmatprep.mubr.bf16.mxu0 %v96
    %1846 = vmatmul.mubr.bf16.gmra.mxu0 %v95
    %v1847 = vpop.f32.mrf.mxu0
    %v1848 = vadd.f32 %v1808, %v1847
    %v1849 = vpop.f32.mrf.mxu0
    %v1850 = vpop.f32.mrf.mxu0
    %v1851 = vpop.f32.mrf.mxu0
    %1852 = vdwg.mxu0
    %1853 = vmatprep.subr.bf16.mxu0 0
    %1854 = vmatpush1.bf16.msra.mxu0 %v1378
    %1855 = vmatprep.subr.bf16.mxu0 0
    %1856 = vmatpush1.bf16.msra.mxu0 %v1377
    %1857 = vmatprep.subr.bf16.mxu0 0
    %1858 = vmatpush1.bf16.msra.mxu0 %v1376
    %1859 = vmatprep.subr.bf16.mxu0 0
    %1860 = vmatpush1.bf16.msra.mxu0 %v1375
    %1861 = vmatprep.subr.bf16.mxu0 0
    %1862 = vmatpush1.bf16.msra.mxu0 %v1374
    %1863 = vmatprep.subr.bf16.mxu0 0
    %1864 = vmatpush1.bf16.msra.mxu0 %v1373
    %1865 = vmatprep.subr.bf16.mxu0 0
    %1866 = vmatpush1.bf16.msra.mxu0 %v1372
    %1867 = vmatprep.subr.bf16.mxu0 0
    %1868 = vmatpush1.bf16.msra.mxu0 %v1371
    %1869 = vmatprep.subr.bf16.mxu0 0
    %1870 = vmatpush2.bf16.msra.mxu0 %v1386
    %1871 = vmatprep.subr.bf16.mxu0 0
    %1872 = vmatpush2.bf16.msra.mxu0 %v1385
    %1873 = vmatprep.subr.bf16.mxu0 0
    %1874 = vmatpush2.bf16.msra.mxu0 %v1384
    %1875 = vmatprep.subr.bf16.mxu0 0
    %1876 = vmatpush2.bf16.msra.mxu0 %v1383
    %1877 = vmatprep.subr.bf16.mxu0 0
    %1878 = vmatpush2.bf16.msra.mxu0 %v1382
    %1879 = vmatprep.subr.bf16.mxu0 0
    %1880 = vmatpush2.bf16.msra.mxu0 %v1381
    %1881 = vmatprep.subr.bf16.mxu0 0
    %1882 = vmatpush2.bf16.msra.mxu0 %v1380
    %1883 = vmatprep.subr.bf16.mxu0 0
    %1884 = vmatpush2.bf16.msra.mxu0 %v1379
    %1885 = vmatprep.mubr.bf16.mxu0 %v98
    %1886 = vmatmul.mubr.bf16.gmra.mxu0 %v97
    %v1887 = vpop.f32.mrf.mxu0
    %v1888 = vadd.f32 %v1848, %v1887
    %v1889 = vpop.f32.mrf.mxu0
    %v1890 = vpop.f32.mrf.mxu0
    %v1891 = vpop.f32.mrf.mxu0
    %1892 = vdwg.mxu0
    %1893 = vmatprep.subr.bf16.mxu0 0
    %1894 = vmatpush1.bf16.msra.mxu0 %v1394
    %1895 = vmatprep.subr.bf16.mxu0 0
    %1896 = vmatpush1.bf16.msra.mxu0 %v1393
    %1897 = vmatprep.subr.bf16.mxu0 0
    %1898 = vmatpush1.bf16.msra.mxu0 %v1392
    %1899 = vmatprep.subr.bf16.mxu0 0
    %1900 = vmatpush1.bf16.msra.mxu0 %v1391
    %1901 = vmatprep.subr.bf16.mxu0 0
    %1902 = vmatpush1.bf16.msra.mxu0 %v1390
    %1903 = vmatprep.subr.bf16.mxu0 0
    %1904 = vmatpush1.bf16.msra.mxu0 %v1389
    %1905 = vmatprep.subr.bf16.mxu0 0
    %1906 = vmatpush1.bf16.msra.mxu0 %v1388
    %1907 = vmatprep.subr.bf16.mxu0 0
    %1908 = vmatpush1.bf16.msra.mxu0 %v1387
    %1909 = vmatprep.subr.bf16.mxu0 0
    %1910 = vmatpush2.bf16.msra.mxu0 %v1402
    %1911 = vmatprep.subr.bf16.mxu0 0
    %1912 = vmatpush2.bf16.msra.mxu0 %v1401
    %1913 = vmatprep.subr.bf16.mxu0 0
    %1914 = vmatpush2.bf16.msra.mxu0 %v1400
    %1915 = vmatprep.subr.bf16.mxu0 0
    %1916 = vmatpush2.bf16.msra.mxu0 %v1399
    %1917 = vmatprep.subr.bf16.mxu0 0
    %1918 = vmatpush2.bf16.msra.mxu0 %v1398
    %1919 = vmatprep.subr.bf16.mxu0 0
    %1920 = vmatpush2.bf16.msra.mxu0 %v1397
    %1921 = vmatprep.subr.bf16.mxu0 0
    %1922 = vmatpush2.bf16.msra.mxu0 %v1396
    %1923 = vmatprep.subr.bf16.mxu0 0
    %1924 = vmatpush2.bf16.msra.mxu0 %v1395
    %1925 = vmatprep.mubr.bf16.mxu0 %v100
    %1926 = vmatmul.mubr.bf16.gmra.mxu0 %v99
    %v1927 = vpop.f32.mrf.mxu0
    %v1928 = vadd.f32 %v1888, %v1927
    %v1929 = vpop.f32.mrf.mxu0
    %v1930 = vpop.f32.mrf.mxu0
    %v1931 = vpop.f32.mrf.mxu0
    %1932 = vdwg.mxu0
    %1933 = vmatprep.subr.bf16.mxu0 0
    %1934 = vmatpush1.bf16.msra.mxu0 %v1410
    %1935 = vmatprep.subr.bf16.mxu0 0
    %1936 = vmatpush1.bf16.msra.mxu0 %v1409
    %1937 = vmatprep.subr.bf16.mxu0 0
    %1938 = vmatpush1.bf16.msra.mxu0 %v1408
    %1939 = vmatprep.subr.bf16.mxu0 0
    %1940 = vmatpush1.bf16.msra.mxu0 %v1407
    %1941 = vmatprep.subr.bf16.mxu0 0
    %1942 = vmatpush1.bf16.msra.mxu0 %v1406
    %1943 = vmatprep.subr.bf16.mxu0 0
    %1944 = vmatpush1.bf16.msra.mxu0 %v1405
    %1945 = vmatprep.subr.bf16.mxu0 0
    %1946 = vmatpush1.bf16.msra.mxu0 %v1404
    %1947 = vmatprep.subr.bf16.mxu0 0
    %1948 = vmatpush1.bf16.msra.mxu0 %v1403
    %1949 = vmatprep.subr.bf16.mxu0 0
    %1950 = vmatpush2.bf16.msra.mxu0 %v1418
    %1951 = vmatprep.subr.bf16.mxu0 0
    %1952 = vmatpush2.bf16.msra.mxu0 %v1417
    %1953 = vmatprep.subr.bf16.mxu0 0
    %1954 = vmatpush2.bf16.msra.mxu0 %v1416
    %1955 = vmatprep.subr.bf16.mxu0 0
    %1956 = vmatpush2.bf16.msra.mxu0 %v1415
    %1957 = vmatprep.subr.bf16.mxu0 0
    %1958 = vmatpush2.bf16.msra.mxu0 %v1414
    %1959 = vmatprep.subr.bf16.mxu0 0
    %1960 = vmatpush2.bf16.msra.mxu0 %v1413
    %1961 = vmatprep.subr.bf16.mxu0 0
    %1962 = vmatpush2.bf16.msra.mxu0 %v1412
    %1963 = vmatprep.subr.bf16.mxu0 0
    %1964 = vmatpush2.bf16.msra.mxu0 %v1411
    %1965 = vmatprep.mubr.bf16.mxu0 %v102
    %1966 = vmatmul.mubr.bf16.gmra.mxu0 %v101
    %v1967 = vpop.f32.mrf.mxu0
    %v1968 = vadd.f32 %v1928, %v1967
    %v1969 = vpop.f32.mrf.mxu0
    %v1970 = vpop.f32.mrf.mxu0
    %v1971 = vpop.f32.mrf.mxu0
    %1972 = vdwg.mxu0
    %1973 = vmatprep.subr.bf16.mxu0 0
    %1974 = vmatpush1.bf16.msra.mxu0 %v1426
    %1975 = vmatprep.subr.bf16.mxu0 0
    %1976 = vmatpush1.bf16.msra.mxu0 %v1425
    %1977 = vmatprep.subr.bf16.mxu0 0
    %1978 = vmatpush1.bf16.msra.mxu0 %v1424
    %1979 = vmatprep.subr.bf16.mxu0 0
    %1980 = vmatpush1.bf16.msra.mxu0 %v1423
    %1981 = vmatprep.subr.bf16.mxu0 0
    %1982 = vmatpush1.bf16.msra.mxu0 %v1422
    %1983 = vmatprep.subr.bf16.mxu0 0
    %1984 = vmatpush1.bf16.msra.mxu0 %v1421
    %1985 = vmatprep.subr.bf16.mxu0 0
    %1986 = vmatpush1.bf16.msra.mxu0 %v1420
    %1987 = vmatprep.subr.bf16.mxu0 0
    %1988 = vmatpush1.bf16.msra.mxu0 %v1419
    %1989 = vmatprep.subr.bf16.mxu0 0
    %1990 = vmatpush2.bf16.msra.mxu0 %v1434
    %1991 = vmatprep.subr.bf16.mxu0 0
    %1992 = vmatpush2.bf16.msra.mxu0 %v1433
    %1993 = vmatprep.subr.bf16.mxu0 0
    %1994 = vmatpush2.bf16.msra.mxu0 %v1432
    %1995 = vmatprep.subr.bf16.mxu0 0
    %1996 = vmatpush2.bf16.msra.mxu0 %v1431
    %1997 = vmatprep.subr.bf16.mxu0 0
    %1998 = vmatpush2.bf16.msra.mxu0 %v1430
    %1999 = vmatprep.subr.bf16.mxu0 0
    %2000 = vmatpush2.bf16.msra.mxu0 %v1429
    %2001 = vmatprep.subr.bf16.mxu0 0
    %2002 = vmatpush2.bf16.msra.mxu0 %v1428
    %2003 = vmatprep.subr.bf16.mxu0 0
    %2004 = vmatpush2.bf16.msra.mxu0 %v1427
    %2005 = vmatprep.mubr.bf16.mxu0 %v104
    %2006 = vmatmul.mubr.bf16.gmra.mxu0 %v103
    %v2007 = vpop.f32.mrf.mxu0
    %v2008 = vadd.f32 %v1968, %v2007
    %v2009 = vpop.f32.mrf.mxu0
    %v2010 = vpop.f32.mrf.mxu0
    %v2011 = vpop.f32.mrf.mxu0
    %2012 = vdwg.mxu0
    %2013 = vmatprep.subr.bf16.mxu0 0
    %2014 = vmatpush1.bf16.msra.mxu0 %v1442
    %2015 = vmatprep.subr.bf16.mxu0 0
    %2016 = vmatpush1.bf16.msra.mxu0 %v1441
    %2017 = vmatprep.subr.bf16.mxu0 0
    %2018 = vmatpush1.bf16.msra.mxu0 %v1440
    %2019 = vmatprep.subr.bf16.mxu0 0
    %2020 = vmatpush1.bf16.msra.mxu0 %v1439
    %2021 = vmatprep.subr.bf16.mxu0 0
    %2022 = vmatpush1.bf16.msra.mxu0 %v1438
    %2023 = vmatprep.subr.bf16.mxu0 0
    %2024 = vmatpush1.bf16.msra.mxu0 %v1437
    %2025 = vmatprep.subr.bf16.mxu0 0
    %2026 = vmatpush1.bf16.msra.mxu0 %v1436
    %2027 = vmatprep.subr.bf16.mxu0 0
    %2028 = vmatpush1.bf16.msra.mxu0 %v1435
    %2029 = vmatprep.subr.bf16.mxu0 0
    %2030 = vmatpush2.bf16.msra.mxu0 %v1450
    %2031 = vmatprep.subr.bf16.mxu0 0
    %2032 = vmatpush2.bf16.msra.mxu0 %v1449
    %2033 = vmatprep.subr.bf16.mxu0 0
    %2034 = vmatpush2.bf16.msra.mxu0 %v1448
    %2035 = vmatprep.subr.bf16.mxu0 0
    %2036 = vmatpush2.bf16.msra.mxu0 %v1447
    %2037 = vmatprep.subr.bf16.mxu0 0
    %2038 = vmatpush2.bf16.msra.mxu0 %v1446
    %2039 = vmatprep.subr.bf16.mxu0 0
    %2040 = vmatpush2.bf16.msra.mxu0 %v1445
    %2041 = vmatprep.subr.bf16.mxu0 0
    %2042 = vmatpush2.bf16.msra.mxu0 %v1444
    %2043 = vmatprep.subr.bf16.mxu0 0
    %2044 = vmatpush2.bf16.msra.mxu0 %v1443
    %2045 = vmatprep.mubr.bf16.mxu0 %v106
    %2046 = vmatmul.mubr.bf16.gmra.mxu0 %v105
    %v2047 = vpop.f32.mrf.mxu0
    %v2048 = vadd.f32 %v2008, %v2047
    %v2049 = vpop.f32.mrf.mxu0
    %v2050 = vpop.f32.mrf.mxu0
    %v2051 = vpop.f32.mrf.mxu0
    %2052 = vdwg.mxu0
    %2053 = vmatprep.subr.bf16.mxu0 0
    %2054 = vmatpush1.bf16.msra.mxu0 %v1458
    %2055 = vmatprep.subr.bf16.mxu0 0
    %2056 = vmatpush1.bf16.msra.mxu0 %v1457
    %2057 = vmatprep.subr.bf16.mxu0 0
    %2058 = vmatpush1.bf16.msra.mxu0 %v1456
    %2059 = vmatprep.subr.bf16.mxu0 0
    %2060 = vmatpush1.bf16.msra.mxu0 %v1455
    %2061 = vmatprep.subr.bf16.mxu0 0
    %2062 = vmatpush1.bf16.msra.mxu0 %v1454
    %2063 = vmatprep.subr.bf16.mxu0 0
    %2064 = vmatpush1.bf16.msra.mxu0 %v1453
    %2065 = vmatprep.subr.bf16.mxu0 0
    %2066 = vmatpush1.bf16.msra.mxu0 %v1452
    %2067 = vmatprep.subr.bf16.mxu0 0
    %2068 = vmatpush1.bf16.msra.mxu0 %v1451
    %2069 = vmatprep.subr.bf16.mxu0 0
    %2070 = vmatpush2.bf16.msra.mxu0 %v1466
    %2071 = vmatprep.subr.bf16.mxu0 0
    %2072 = vmatpush2.bf16.msra.mxu0 %v1465
    %2073 = vmatprep.subr.bf16.mxu0 0
    %2074 = vmatpush2.bf16.msra.mxu0 %v1464
    %2075 = vmatprep.subr.bf16.mxu0 0
    %2076 = vmatpush2.bf16.msra.mxu0 %v1463
    %2077 = vmatprep.subr.bf16.mxu0 0
    %2078 = vmatpush2.bf16.msra.mxu0 %v1462
    %2079 = vmatprep.subr.bf16.mxu0 0
    %2080 = vmatpush2.bf16.msra.mxu0 %v1461
    %2081 = vmatprep.subr.bf16.mxu0 0
    %2082 = vmatpush2.bf16.msra.mxu0 %v1460
    %2083 = vmatprep.subr.bf16.mxu0 0
    %2084 = vmatpush2.bf16.msra.mxu0 %v1459
    %2085 = vmatprep.mubr.bf16.mxu0 %v108
    %2086 = vmatmul.mubr.bf16.gmra.mxu0 %v107
    %v2087 = vpop.f32.mrf.mxu0
    %v2088 = vadd.f32 %v2048, %v2087
    %v2089 = vpop.f32.mrf.mxu0
    %v2090 = vpop.f32.mrf.mxu0
    %v2091 = vpop.f32.mrf.mxu0
    %2092 = vdwg.mxu0
    %2093 = vmatprep.subr.bf16.mxu0 0
    %2094 = vmatpush1.bf16.msra.mxu0 %v1474
    %2095 = vmatprep.subr.bf16.mxu0 0
    %2096 = vmatpush1.bf16.msra.mxu0 %v1473
    %2097 = vmatprep.subr.bf16.mxu0 0
    %2098 = vmatpush1.bf16.msra.mxu0 %v1472
    %2099 = vmatprep.subr.bf16.mxu0 0
    %2100 = vmatpush1.bf16.msra.mxu0 %v1471
    %2101 = vmatprep.subr.bf16.mxu0 0
    %2102 = vmatpush1.bf16.msra.mxu0 %v1470
    %2103 = vmatprep.subr.bf16.mxu0 0
    %2104 = vmatpush1.bf16.msra.mxu0 %v1469
    %2105 = vmatprep.subr.bf16.mxu0 0
    %2106 = vmatpush1.bf16.msra.mxu0 %v1468
    %2107 = vmatprep.subr.bf16.mxu0 0
    %2108 = vmatpush1.bf16.msra.mxu0 %v1467
    %2109 = vmatprep.subr.bf16.mxu0 0
    %2110 = vmatpush2.bf16.msra.mxu0 %v1482
    %2111 = vmatprep.subr.bf16.mxu0 0
    %2112 = vmatpush2.bf16.msra.mxu0 %v1481
    %2113 = vmatprep.subr.bf16.mxu0 0
    %2114 = vmatpush2.bf16.msra.mxu0 %v1480
    %2115 = vmatprep.subr.bf16.mxu0 0
    %2116 = vmatpush2.bf16.msra.mxu0 %v1479
    %2117 = vmatprep.subr.bf16.mxu0 0
    %2118 = vmatpush2.bf16.msra.mxu0 %v1478
    %2119 = vmatprep.subr.bf16.mxu0 0
    %2120 = vmatpush2.bf16.msra.mxu0 %v1477
    %2121 = vmatprep.subr.bf16.mxu0 0
    %2122 = vmatpush2.bf16.msra.mxu0 %v1476
    %2123 = vmatprep.subr.bf16.mxu0 0
    %2124 = vmatpush2.bf16.msra.mxu0 %v1475
    %2125 = vmatprep.mubr.bf16.mxu0 %v110
    %2126 = vmatmul.mubr.bf16.gmra.mxu0 %v109
    %v2127 = vpop.f32.mrf.mxu0
    %v2128 = vadd.f32 %v2088, %v2127
    %v2129 = vpop.f32.mrf.mxu0
    %v2130 = vpop.f32.mrf.mxu0
    %v2131 = vpop.f32.mrf.mxu0
    %2132 = vdwg.mxu0
    %2133 = vmatprep.subr.bf16.mxu0 0
    %2134 = vmatpush1.bf16.msra.mxu0 %v1490
    %2135 = vmatprep.subr.bf16.mxu0 0
    %2136 = vmatpush1.bf16.msra.mxu0 %v1489
    %2137 = vmatprep.subr.bf16.mxu0 0
    %2138 = vmatpush1.bf16.msra.mxu0 %v1488
    %2139 = vmatprep.subr.bf16.mxu0 0
    %2140 = vmatpush1.bf16.msra.mxu0 %v1487
    %2141 = vmatprep.subr.bf16.mxu0 0
    %2142 = vmatpush1.bf16.msra.mxu0 %v1486
    %2143 = vmatprep.subr.bf16.mxu0 0
    %2144 = vmatpush1.bf16.msra.mxu0 %v1485
    %2145 = vmatprep.subr.bf16.mxu0 0
    %2146 = vmatpush1.bf16.msra.mxu0 %v1484
    %2147 = vmatprep.subr.bf16.mxu0 0
    %2148 = vmatpush1.bf16.msra.mxu0 %v1483
    %2149 = vmatprep.subr.bf16.mxu0 0
    %2150 = vmatpush2.bf16.msra.mxu0 %v1498
    %2151 = vmatprep.subr.bf16.mxu0 0
    %2152 = vmatpush2.bf16.msra.mxu0 %v1497
    %2153 = vmatprep.subr.bf16.mxu0 0
    %2154 = vmatpush2.bf16.msra.mxu0 %v1496
    %2155 = vmatprep.subr.bf16.mxu0 0
    %2156 = vmatpush2.bf16.msra.mxu0 %v1495
    %2157 = vmatprep.subr.bf16.mxu0 0
    %2158 = vmatpush2.bf16.msra.mxu0 %v1494
    %2159 = vmatprep.subr.bf16.mxu0 0
    %2160 = vmatpush2.bf16.msra.mxu0 %v1493
    %2161 = vmatprep.subr.bf16.mxu0 0
    %2162 = vmatpush2.bf16.msra.mxu0 %v1492
    %2163 = vmatprep.subr.bf16.mxu0 0
    %2164 = vmatpush2.bf16.msra.mxu0 %v1491
    %2165 = vmatprep.mubr.bf16.mxu0 %v112
    %2166 = vmatmul.mubr.bf16.gmra.mxu0 %v111
    %v2167 = vpop.f32.mrf.mxu0
    %v2168 = vadd.f32 %v2128, %v2167
    %v2169 = vpop.f32.mrf.mxu0
    %v2170 = vpop.f32.mrf.mxu0
    %v2171 = vpop.f32.mrf.mxu0
    %2172 = vdwg.mxu0
    %2173 = vmatprep.subr.bf16.mxu0 0
    %2174 = vmatpush1.bf16.msra.mxu0 %v1506
    %2175 = vmatprep.subr.bf16.mxu0 0
    %2176 = vmatpush1.bf16.msra.mxu0 %v1505
    %2177 = vmatprep.subr.bf16.mxu0 0
    %2178 = vmatpush1.bf16.msra.mxu0 %v1504
    %2179 = vmatprep.subr.bf16.mxu0 0
    %2180 = vmatpush1.bf16.msra.mxu0 %v1503
    %2181 = vmatprep.subr.bf16.mxu0 0
    %2182 = vmatpush1.bf16.msra.mxu0 %v1502
    %2183 = vmatprep.subr.bf16.mxu0 0
    %2184 = vmatpush1.bf16.msra.mxu0 %v1501
    %2185 = vmatprep.subr.bf16.mxu0 0
    %2186 = vmatpush1.bf16.msra.mxu0 %v1500
    %2187 = vmatprep.subr.bf16.mxu0 0
    %2188 = vmatpush1.bf16.msra.mxu0 %v1499
    %2189 = vmatprep.subr.bf16.mxu0 0
    %2190 = vmatpush2.bf16.msra.mxu0 %v1514
    %2191 = vmatprep.subr.bf16.mxu0 0
    %2192 = vmatpush2.bf16.msra.mxu0 %v1513
    %2193 = vmatprep.subr.bf16.mxu0 0
    %2194 = vmatpush2.bf16.msra.mxu0 %v1512
    %2195 = vmatprep.subr.bf16.mxu0 0
    %2196 = vmatpush2.bf16.msra.mxu0 %v1511
    %2197 = vmatprep.subr.bf16.mxu0 0
    %2198 = vmatpush2.bf16.msra.mxu0 %v1510
    %2199 = vmatprep.subr.bf16.mxu0 0
    %2200 = vmatpush2.bf16.msra.mxu0 %v1509
    %2201 = vmatprep.subr.bf16.mxu0 0
    %2202 = vmatpush2.bf16.msra.mxu0 %v1508
    %2203 = vmatprep.subr.bf16.mxu0 0
    %2204 = vmatpush2.bf16.msra.mxu0 %v1507
    %2205 = vmatprep.mubr.bf16.mxu0 %v114
    %2206 = vmatmul.mubr.bf16.gmra.mxu0 %v113
    %v2207 = vpop.f32.mrf.mxu0
    %v2208 = vadd.f32 %v2168, %v2207
    %v2209 = vpop.f32.mrf.mxu0
    %v2210 = vpop.f32.mrf.mxu0
    %v2211 = vpop.f32.mrf.mxu0
    %2212 = vdwg.mxu0
    %2213 = vmatprep.subr.bf16.mxu0 0
    %2214 = vmatpush1.bf16.msra.mxu0 %v1731
    %2215 = vmatprep.subr.bf16.mxu0 0
    %2216 = vmatpush1.bf16.msra.mxu0 %v1521
    %2217 = vmatprep.subr.bf16.mxu0 0
    %2218 = vmatpush1.bf16.msra.mxu0 %v1520
    %2219 = vmatprep.subr.bf16.mxu0 0
    %2220 = vmatpush1.bf16.msra.mxu0 %v1519
    %2221 = vmatprep.subr.bf16.mxu0 0
    %2222 = vmatpush1.bf16.msra.mxu0 %v1518
    %2223 = vmatprep.subr.bf16.mxu0 0
    %2224 = vmatpush1.bf16.msra.mxu0 %v1517
    %2225 = vmatprep.subr.bf16.mxu0 0
    %2226 = vmatpush1.bf16.msra.mxu0 %v1516
    %2227 = vmatprep.subr.bf16.mxu0 0
    %2228 = vmatpush1.bf16.msra.mxu0 %v1515
    %2229 = vmatprep.subr.bf16.mxu0 0
    %2230 = vmatpush2.bf16.msra.mxu0 0
    %2231 = vmatprep.subr.bf16.mxu0 0
    %2232 = vmatpush2.bf16.msra.mxu0 0
    %2233 = vmatprep.subr.bf16.mxu0 0
    %2234 = vmatpush2.bf16.msra.mxu0 0
    %2235 = vmatprep.subr.bf16.mxu0 0
    %2236 = vmatpush2.bf16.msra.mxu0 0
    %2237 = vmatprep.subr.bf16.mxu0 0
    %2238 = vmatpush2.bf16.msra.mxu0 0
    %2239 = vmatprep.subr.bf16.mxu0 0
    %2240 = vmatpush2.bf16.msra.mxu0 0
    %2241 = vmatprep.subr.bf16.mxu0 0
    %2242 = vmatpush2.bf16.msra.mxu0 0
    %2243 = vmatprep.subr.bf16.mxu0 0
    %2244 = vmatpush2.bf16.msra.mxu0 0
    %2245 = vmatprep.mubr.bf16.mxu0 0
    %2246 = vmatmul.mubr.bf16.gmra.mxu0 %v1724
    %v2247 = vpop.f32.mrf.mxu0
    %v2248 = vadd.f32 %v2208, %v2247
    %v2249 = vpop.f32.mrf.mxu0
    %v2250 = vpop.f32.mrf.mxu0
    %v2251 = vpop.f32.mrf.mxu0
    %2252 = vdwg.mxu0
    %2253 = vrot.lane.b32.xlu0 %v2248, 64
    %v2254 = vpop.permute.xlu0 %2253
    %v2255 = vmax.f32 %v2248, %v2254
    %vm2256 = vcmp.gt.f32.partialorder %v2255, 1.0
    %v2257 = vsel %vm2256, 1, 0
    %v2258 = vcvt.s32.f32 %v2257
    %v2259 = vld [vmem:[#allocation6] sm:$0xff]
    %v2260 = vld [vmem:[#allocation6 + $0x8] sm:$0xff]
    %v2261 = vld [vmem:[#allocation6 + $0x10] sm:$0xff]
    %v2262 = vld [vmem:[#allocation6 + $0x18] sm:$0xff]
    %v2263 = vld [vmem:[#allocation6 + $0x20] sm:$0xff]
    %v2264 = vld [vmem:[#allocation6 + $0x28] sm:$0xff]
    %v2265 = vld [vmem:[#allocation6 + $0x30] sm:$0xff]
    %v2266 = vld [vmem:[#allocation6 + $0x38] sm:$0xff]
    %v2267 = vld [vmem:[%s4] sm:$0x1]
    %v2269 = vlaneseq
    %v2270 = vshrl.u32 %v2269, 7
    %v2271 = vsub.s32 0, %v2270
    %v2272 = vrot.slane %v2267, %v2271
    %vm2274 = vcmask 523264
    %v2276 = vsel %vm2274, %v2258, 0
    %2278 = vmatprep.subr.mxu0 0.0
    %2279 = vmatpush1.msra.mxu0 0.0
    %2280 = vmatprep.subr.mxu0 0.0
    %2281 = vmatpush1.msra.mxu0 0.0
    %2282 = vmatprep.subr.mxu0 0.0
    %2283 = vmatpush1.msra.mxu0 0.0
    %2284 = vmatprep.subr.mxu0 0.0
    %2285 = vmatpush1.msra.mxu0 0.0
    %2286 = vmatprep.subr.mxu0 0.0
    %2287 = vmatpush1.msra.mxu0 0.0
    %2288 = vmatprep.subr.mxu0 0.0
    %2289 = vmatpush1.msra.mxu0 0.0
    %2290 = vmatprep.subr.mxu0 0.0
    %2291 = vmatpush1.msra.mxu0 0.0
    %2292 = vmatprep.subr.mxu0 0.0
    %2293 = vmatpush1.msra.mxu0 0.0
    %2294 = vmatprep.subr.mxu0 0.0
    %2295 = vmatpush1.msra.mxu0 %v2266
    %2296 = vmatprep.subr.mxu0 0.0
    %2297 = vmatpush1.msra.mxu0 %v2265
    %2298 = vmatprep.subr.mxu0 0.0
    %2299 = vmatpush1.msra.mxu0 %v2264
    %2300 = vmatprep.subr.mxu0 0.0
    %2301 = vmatpush1.msra.mxu0 %v2263
    %2302 = vmatprep.subr.mxu0 0.0
    %2303 = vmatpush1.msra.mxu0 %v2262
    %2304 = vmatprep.subr.mxu0 0.0
    %2305 = vmatpush1.msra.mxu0 %v2261
    %2306 = vmatprep.subr.mxu0 0.0
    %2307 = vmatpush1.msra.mxu0 %v2260
    %2308 = vmatprep.subr.mxu0 0.0
    %2309 = vmatpush1.msra.mxu0 %v2259
    %2310 = vmatprep.subr.mxu0 0.0
    %2311 = vmatpush2.msra.mxu0 0.0
    %2312 = vmatprep.subr.mxu0 0.0
    %2313 = vmatpush2.msra.mxu0 0.0
    %2314 = vmatprep.subr.mxu0 0.0
    %2315 = vmatpush2.msra.mxu0 0.0
    %2316 = vmatprep.subr.mxu0 0.0
    %2317 = vmatpush2.msra.mxu0 0.0
    %2318 = vmatprep.subr.mxu0 0.0
    %2319 = vmatpush2.msra.mxu0 0.0
    %2320 = vmatprep.subr.mxu0 0.0
    %2321 = vmatpush2.msra.mxu0 0.0
    %2322 = vmatprep.subr.mxu0 0.0
    %2323 = vmatpush2.msra.mxu0 0.0
    %2324 = vmatprep.subr.mxu0 0.0
    %2325 = vmatpush2.msra.mxu0 0.0
    %2326 = vmatprep.subr.mxu0 0.0
    %2327 = vmatpush2.msra.mxu0 0.0
    %2328 = vmatprep.subr.mxu0 0.0
    %2329 = vmatpush2.msra.mxu0 0.0
    %2330 = vmatprep.subr.mxu0 0.0
    %2331 = vmatpush2.msra.mxu0 0.0
    %2332 = vmatprep.subr.mxu0 0.0
    %2333 = vmatpush2.msra.mxu0 0.0
    %2334 = vmatprep.subr.mxu0 0.0
    %2335 = vmatpush2.msra.mxu0 0.0
    %2336 = vmatprep.subr.mxu0 0.0
    %2337 = vmatpush2.msra.mxu0 0.0
    %2338 = vmatprep.subr.mxu0 0.0
    %2339 = vmatpush2.msra.mxu0 0.0
    %2340 = vmatprep.subr.mxu0 0.0
    %2341 = vmatpush2.msra.mxu0 0.0
    %2342 = vmatprep.mubr.f32.mxu0 0.0
    %2343 = vmatmul.mubr.f32.gmra.mxu0 %v2276
    %v2344 = vpop.f32.mrf.mxu0
    %v2345 = vadd.f32 %v2272, %v2344
    %v2346 = vpop.f32.mrf.mxu0
    %2347 = vdwg.mxu0
    %2349 = vrot.lane.b32.xlu0 %v2345, 96
    %v2350 = vpop.permute.xlu0 %2349
    %v2352 = vmax.f32 %v2345, %v2350
    %vm2353 = vcmp.gt.f32.partialorder %v2352, 1.0
    %v2354 = vsel %vm2353, 1, 0
    %v2355 = vcvt.s32.f32 %v2354
    %v2356 = vld [vmem:[%s5] sm:$0xff]
    %v2357 = vld [vmem:[%s5 + $0x8] sm:$0xff]
    %v2358 = vld [vmem:[%s5 + $0x10] sm:$0xff]
    %v2359 = vld [vmem:[%s5 + $0x18] sm:$0xff]
    %v2360 = vld [vmem:[%s6] sm:$0x1]
    %v2362 = vlaneseq
    %v2363 = vshrl.u32 %v2362, 7
    %v2364 = vsub.s32 0, %v2363
    %v2365 = vrot.slane %v2360, %v2364
    %vm2367 = vcmask 261120
    %v2369 = vsel %vm2367, %v2355, 0
    %2371 = vmatprep.subr.mxu0 0.0
    %2372 = vmatpush1.msra.mxu0 0.0
    %2373 = vmatprep.subr.mxu0 0.0
    %2374 = vmatpush1.msra.mxu0 0.0
    %2375 = vmatprep.subr.mxu0 0.0
    %2376 = vmatpush1.msra.mxu0 0.0
    %2377 = vmatprep.subr.mxu0 0.0
    %2378 = vmatpush1.msra.mxu0 0.0
    %2379 = vmatprep.subr.mxu0 0.0
    %2380 = vmatpush1.msra.mxu0 0.0
    %2381 = vmatprep.subr.mxu0 0.0
    %2382 = vmatpush1.msra.mxu0 0.0
    %2383 = vmatprep.subr.mxu0 0.0
    %2384 = vmatpush1.msra.mxu0 0.0
    %2385 = vmatprep.subr.mxu0 0.0
    %2386 = vmatpush1.msra.mxu0 0.0
    %2387 = vmatprep.subr.mxu0 0.0
    %2388 = vmatpush1.msra.mxu0 0.0
    %2389 = vmatprep.subr.mxu0 0.0
    %2390 = vmatpush1.msra.mxu0 0.0
    %2391 = vmatprep.subr.mxu0 0.0
    %2392 = vmatpush1.msra.mxu0 0.0
    %2393 = vmatprep.subr.mxu0 0.0
    %2394 = vmatpush1.msra.mxu0 0.0
    %2395 = vmatprep.subr.mxu0 0.0
    %2396 = vmatpush1.msra.mxu0 %v2359
    %2397 = vmatprep.subr.mxu0 0.0
    %2398 = vmatpush1.msra.mxu0 %v2358
    %2399 = vmatprep.subr.mxu0 0.0
    %2400 = vmatpush1.msra.mxu0 %v2357
    %2401 = vmatprep.subr.mxu0 0.0
    %2402 = vmatpush1.msra.mxu0 %v2356
    %2403 = vmatprep.subr.mxu0 0.0
    %2404 = vmatpush2.msra.mxu0 0.0
    %2405 = vmatprep.subr.mxu0 0.0
    %2406 = vmatpush2.msra.mxu0 0.0
    %2407 = vmatprep.subr.mxu0 0.0
    %2408 = vmatpush2.msra.mxu0 0.0
    %2409 = vmatprep.subr.mxu0 0.0
    %2410 = vmatpush2.msra.mxu0 0.0
    %2411 = vmatprep.subr.mxu0 0.0
    %2412 = vmatpush2.msra.mxu0 0.0
    %2413 = vmatprep.subr.mxu0 0.0
    %2414 = vmatpush2.msra.mxu0 0.0
    %2415 = vmatprep.subr.mxu0 0.0
    %2416 = vmatpush2.msra.mxu0 0.0
    %2417 = vmatprep.subr.mxu0 0.0
    %2418 = vmatpush2.msra.mxu0 0.0
    %2419 = vmatprep.subr.mxu0 0.0
    %2420 = vmatpush2.msra.mxu0 0.0
    %2421 = vmatprep.subr.mxu0 0.0
    %2422 = vmatpush2.msra.mxu0 0.0
    %2423 = vmatprep.subr.mxu0 0.0
    %2424 = vmatpush2.msra.mxu0 0.0
    %2425 = vmatprep.subr.mxu0 0.0
    %2426 = vmatpush2.msra.mxu0 0.0
    %2427 = vmatprep.subr.mxu0 0.0
    %2428 = vmatpush2.msra.mxu0 0.0
    %2429 = vmatprep.subr.mxu0 0.0
    %2430 = vmatpush2.msra.mxu0 0.0
    %2431 = vmatprep.subr.mxu0 0.0
    %2432 = vmatpush2.msra.mxu0 0.0
    %2433 = vmatprep.subr.mxu0 0.0
    %2434 = vmatpush2.msra.mxu0 0.0
    %2435 = vmatprep.mubr.f32.mxu0 0.0
    %2436 = vmatmul.mubr.f32.gmra.mxu0 %v2369
    %v2437 = vpop.f32.mrf.mxu0
    %v2438 = vadd.f32 %v2365, %v2437
    %v2439 = vpop.f32.mrf.mxu0
    %2440 = vdwg.mxu0
    %vm2441 = vcmask 15360
    %2442 = vst.msk [vmem:[%s7] sm:$0xff] %vm2441, %v2438
    // Predicated region
    $region42: #{tpu_custom_call.1} parent=1 // pred_check
      _
    $region43: #{tpu_custom_call.1} parent=1 // pred_check_branch
      %2444 = sbr.rel (0) target = $region45
    $region44: #{tpu_custom_call.1} parent=1 // pred_region
      _
    $region45: #{tpu_custom_call.1} parent=1 // pred_fallthru
      _
    // Predicated region
    $region46: #{tpu_custom_call.1} parent=1 // pred_check
      _
    $region47: #{tpu_custom_call.1} parent=1 // pred_check_branch
      %2446 = sbr.rel (0) target = $region49
    $region48: #{tpu_custom_call.1} parent=1 // pred_region
      _
    $region49: #{tpu_custom_call.1} parent=1 // pred_fallthru
      _
    %2447 = vsyncpa [#allocation3], 1
    %2448 = vsyncpa [#allocation5], 1

</llo_original>
